<compile_context>
chip_gen: v6e
topology: v6e:2x2x1
jax: 0.10.0
libtpu: 0.0.40
codegen_flags: <defaults>
</compile_context>

<pallas_src>
import functools

import jax
import jax.numpy as jnp
from jax import lax
from jax.experimental import pallas as pl
from jax.experimental.pallas import tpu as pltpu

EPS = 1e-5                    # nn.BatchNorm2d default eps
LANE = 128                    # TPU lane width; channel dims are padded to this
MATMUL_DTYPE = jnp.float32    # flip to jnp.bfloat16 on v6e/v7x (accum stays f32)


# ----------------------------------------------------------------------- utilities
def _cp(c):
    """Channel count rounded up to a lane multiple (lane-dense layout)."""
    return ((c + LANE - 1) // LANE) * LANE


def _conv_out(h, stride):
    # 3x3 kernel, padding 1, dilation 1
    return (h - 1) // stride + 1


def _choose_tm(m):
    """Row tile for the flat M axis.  Capped at 256 so the toy problem still runs a
    multi-tile grid; raise toward 512-1024 rows for production shapes."""
    for tm in (256, 128, 64, 32, 16, 8):
        if m % tm == 0:
            return tm
    return m


def _pad_axis(a, axis, target):
    pad = target - a.shape[axis]
    if pad == 0:
        return a
    widths = [(0, 0)] * a.ndim
    widths[axis] = (0, pad)
    return jnp.pad(a, widths)


# ------------------------------------------------------------------------- kernels
@functools.lru_cache(maxsize=None)
def _dw_conv_call(n, h, w, cp, stride):
    """Depthwise 3x3 conv (pad=1) + bias.  One image per grid step; the 9 taps are
    built in-kernel from unit-stride slices of the resident padded block, so the
    wrapper never materializes a KhKw-expanded copy in HBM."""
    ho, wo = _conv_out(h, stride), _conv_out(w, stride)

    if stride == 1:
        hp, wp = h + 2, w + 2

        def kernel(x_ref, w_ref, b_ref, z_ref):
            z_ref[0] = jnp.zeros((ho, wo, cp), jnp.float32) + b_ref[0]
            for ky in range(3):
                for kx in range(3):
                    z_ref[0] = z_ref[0] + (
                        x_ref[0, ky:ky + ho, kx:kx + wo, :] * w_ref[ky * 3 + kx])

        x_spec = pl.BlockSpec((1, hp, wp, cp), lambda i: (i, 0, 0, 0))
    else:
        hq, wq = ho + 1, wo + 1

        def kernel(x_ref, w_ref, b_ref, z_ref):
            z_ref[0] = jnp.zeros((ho, wo, cp), jnp.float32) + b_ref[0]
            for ky in range(3):
                for kx in range(3):
                    a, pa = ky // 2, ky % 2
                    c, pb = kx // 2, kx % 2
                    z_ref[0] = z_ref[0] + (
                        x_ref[0, pa * 2 + pb, a:a + ho, c:c + wo, :]
                        * w_ref[ky * 3 + kx])

        x_spec = pl.BlockSpec((1, 4, hq, wq, cp), lambda i: (i, 0, 0, 0, 0))

    fn = pl.pallas_call(
        kernel,
        grid=(n,),
        in_specs=[x_spec,
                  pl.BlockSpec((9, cp), lambda i: (0, 0)),   # dw weights, resident
                  pl.BlockSpec((1, cp), lambda i: (0, 0))],  # dw bias, resident
        out_specs=pl.BlockSpec((1, ho, wo, cp), lambda i: (i, 0, 0, 0)),
        out_shape=jax.ShapeDtypeStruct((n, ho, wo, cp), jnp.float32),
        compiler_params=pltpu.CompilerParams(dimension_semantics=("parallel",)),
    )
    return jax.jit(fn)


@functools.lru_cache(maxsize=None)
def _pw_conv_stats_call(m, cip, cop):
    """1x1 conv (+bias) tiled over flat M ('parallel' grid, weight resident), fused
    with per-tile BatchNorm partial sums so BN needs no extra pass over activations."""
    tm = _choose_tm(m)
    nt = m // tm

    def kernel(z_ref, w_ref, b_ref, y_ref, st_ref):
        y = jnp.dot(z_ref[...], w_ref[...],
                    preferred_element_type=jnp.float32) + b_ref[...]
        y_ref[...] = y
        st_ref[0, :, 0:cop] = jnp.sum(y, axis=0, keepdims=True)
        st_ref[0, :, cop:2 * cop] = jnp.sum(y * y, axis=0, keepdims=True)

    fn = pl.pallas_call(
        kernel,
        grid=(nt,),
        in_specs=[pl.BlockSpec((tm, cip), lambda i: (i, 0)),
                  pl.BlockSpec((cip, cop), lambda i: (0, 0)),   # weight resident
                  pl.BlockSpec((1, cop), lambda i: (0, 0))],    # bias resident
        out_specs=(pl.BlockSpec((tm, cop), lambda i: (i, 0)),
                   pl.BlockSpec((1, 1, 2 * cop), lambda i: (i, 0, 0))),
        out_shape=(jax.ShapeDtypeStruct((m, cop), jnp.float32),
                   jax.ShapeDtypeStruct((nt, 1, 2 * cop), jnp.float32)),
        compiler_params=pltpu.CompilerParams(dimension_semantics=("parallel",)),
        cost_estimate=pl.CostEstimate(
            flops=2 * m * cip * cop, transcendentals=0,
            bytes_accessed=4 * (m * cip + cip * cop + m * cop + nt * 2 * cop)),
    )
    return jax.jit(fn)


@functools.lru_cache(maxsize=None)
def _bn_norm_call(m, cop, nt, relu, has_res):
    """Training-mode BatchNorm normalize + affine from the global batch statistics
    (reduced from the tiny per-tile partials), optional residual add, optional ReLU."""
    tm = m // nt
    inv_n = 1.0 / float(m)

    def kernel(*refs):
        if has_res:
            y_ref, st_ref, g_ref, b_ref, r_ref, o_ref = refs
        else:
            y_ref, st_ref, g_ref, b_ref, o_ref = refs
        tot = jnp.sum(st_ref[...], axis=0)                 # (1, 2*cop), tiny
        mean = tot[:, 0:cop] * inv_n                       # (1, cop)
        var = jnp.maximum(tot[:, cop:2 * cop] * inv_n - mean * mean, 0.0)
        scale = g_ref[...] * lax.rsqrt(var + EPS)
        shift = b_ref[...] - mean * scale
        out = y_ref[...] * scale + shift
        if has_res:
            out = out + r_ref[...]
        if relu:
            out = jnp.maximum(out, 0.0)
        o_ref[...] = out

    in_specs = [pl.BlockSpec((tm, cop), lambda i: (i, 0)),
                pl.BlockSpec((nt, 1, 2 * cop), lambda i: (0, 0, 0)),  # stats resident
                pl.BlockSpec((1, cop), lambda i: (0, 0)),             # gamma resident
                pl.BlockSpec((1, cop), lambda i: (0, 0))]             # beta resident
    if has_res:
        in_specs.append(pl.BlockSpec((tm, cop), lambda i: (i, 0)))

    fn = pl.pallas_call(
        kernel,
        grid=(nt,),
        in_specs=in_specs,
        out_specs=pl.BlockSpec((tm, cop), lambda i: (i, 0)),
        out_shape=jax.ShapeDtypeStruct((m, cop), jnp.float32),
        compiler_params=pltpu.CompilerParams(dimension_semantics=("parallel",)),
    )
    return jax.jit(fn)


# ----------------------------------------------------------------- layer wrappers
def pallas_depthwise(x_p, w_dw_p, b_dw_p, stride):
    """x_p: (N,H,W,Cp) channel-padded NHWC.  Returns (N,Ho,Wo,Cp)."""
    n, h, w, cp = x_p.shape
    xp = jnp.pad(x_p, ((0, 0), (1, 1), (1, 1), (0, 0)))
    if stride == 1:
        xin = xp
    else:
        # 2x2 phase split so stride-2 taps become unit-stride slices in-kernel
        # (layout glue only, ~1x copy of the input).
        ho, wo = _conv_out(h, 2), _conv_out(w, 2)
        hq, wq = ho + 1, wo + 1
        xin = jnp.stack(
            [xp[:, pa:pa + 2 * hq:2, pb:pb + 2 * wq:2, :]
             for pa in range(2) for pb in range(2)], axis=1)
    # TODO(synk): at ImageNet-scale spatial sizes, switch the per-image block to a
    # row-band halo tile brought in via manual make_async_copy double-buffering.
    return _dw_conv_call(n, h, w, cp, stride)(xin, w_dw_p, b_dw_p)


def pallas_matmul_bn(x_flat, w_p, b_p, gamma_p, beta_p, relu, residual_flat=None):
    """1x1 conv + training-mode BatchNorm (+ optional residual add) (+ optional ReLU)."""
    m, cip = x_flat.shape
    cop = w_p.shape[1]
    y, st = _pw_conv_stats_call(m, cip, cop)(
        x_flat.astype(MATMUL_DTYPE), w_p.astype(MATMUL_DTYPE), b_p)
    nt = st.shape[0]
    if residual_flat is None:
        return _bn_norm_call(m, cop, nt, relu, False)(y, st, gamma_p, beta_p)
    return _bn_norm_call(m, cop, nt, relu, True)(y, st, gamma_p, beta_p, residual_flat)


def pallas_sep_conv(x_p, p, stride, act, residual_p=None):
    """SeparableConv: depthwise 3x3 -> pointwise 1x1 -> BN -> (ReLU).
    With residual_p this is an XceptionBlock tail: relu(bn(conv(x)) + residual)."""
    z = pallas_depthwise(x_p, p["w_dw"], p["b_dw"], stride)
    n, ho, wo, cip = z.shape
    cop = p["w_pw"].shape[1]
    if residual_p is not None:
        res_flat = residual_p.reshape(n * ho * wo, cop)
        relu_flag = True          # module: relu(out + shortcut); sep3 has act=False
    else:
        res_flat = None
        relu_flag = act
    out = pallas_matmul_bn(z.reshape(n * ho * wo, cip), p["w_pw"], p["b_pw"],
                           p["gamma"], p["beta"], relu_flag, res_flat)
    return out.reshape(n, ho, wo, cop)


def pallas_conv1x1_bn(x_p, p, stride):
    """ConvBnRelu(kernel=1, stride, act=False): the XceptionBlock shortcut."""
    xs = x_p[:, ::stride, ::stride, :] if stride > 1 else x_p
    n, ho, wo, cip = xs.shape
    cop = p["w"].shape[1]
    out = pallas_matmul_bn(xs.reshape(n * ho * wo, cip), p["w"], p["b"],
                           p["gamma"], p["beta"], relu=False)
    return out.reshape(n, ho, wo, cop)


def pallas_xception_block(x_p, p, stride, need_short):
    h1 = pallas_sep_conv(x_p, p["sep1"], 1, True)
    h2 = pallas_sep_conv(h1, p["sep2"], 1, True)
    shortcut = pallas_conv1x1_bn(x_p, p["short"], 2) if need_short else x_p
    return pallas_sep_conv(h2, p["sep3"], stride, False, residual_p=shortcut)


def _pad_sep_params(p, ic, oc):
    cip, cop = _cp(ic), _cp(oc)
    return dict(
        w_dw=_pad_axis(p["w_dw"].reshape(9, ic), 1, cip),
        b_dw=_pad_axis(p["b_dw"].reshape(1, ic), 1, cip),
        w_pw=_pad_axis(_pad_axis(p["w_pw"], 0, cip), 1, cop),
        b_pw=_pad_axis(p["b_pw"].reshape(1, oc), 1, cop),
        gamma=_pad_axis(p["gamma"].reshape(1, oc), 1, cop),
        beta=_pad_axis(p["beta"].reshape(1, oc), 1, cop))


def _pad_short_params(p, ic, oc):
    cip, cop = _cp(ic), _cp(oc)
    return dict(
        w=_pad_axis(_pad_axis(p["w"], 0, cip), 1, cop),
        b=_pad_axis(p["b"].reshape(1, oc), 1, cop),
        gamma=_pad_axis(p["gamma"].reshape(1, oc), 1, cop),
        beta=_pad_axis(p["beta"].reshape(1, oc), 1, cop))


def pallas_xception_body(x_nchw, body_params):
    """Full XceptionBody forward (training-mode BN).  NCHW in / NCHW out like PyTorch."""
    x = jnp.transpose(x_nchw, (0, 2, 3, 1)).astype(jnp.float32)
    x = _pad_axis(x, 3, _cp(x.shape[-1]))
    out_c = x_nchw.shape[1]
    for kind, cfg, p in body_params:
        ic, oc, st = cfg["in_c"], cfg["out_c"], cfg["stride"]
        if kind == "xblock":
            pp = dict(sep1=_pad_sep_params(p["sep1"], ic, oc),
                      sep2=_pad_sep_params(p["sep2"], oc, oc),
                      sep3=_pad_sep_params(p["sep3"], oc, oc))
            if cfg["need_short"]:
                pp["short"] = _pad_short_params(p["short"], ic, oc)
            x = pallas_xception_block(x, pp, st, cfg["need_short"])
        else:
            x = pallas_sep_conv(x, _pad_sep_params(p, ic, oc), 1, True)
        out_c = oc
    x = x[..., :out_c]
    return jnp.transpose(x, (0, 3, 1, 2))


# --------------------------------------------------------- parameters & reference
def _init_sep(key, ic, oc):
    k1, k2, k3, k4, k5, k6 = jax.random.split(key, 6)
    return dict(
        w_dw=0.3 * jax.random.normal(k1, (3, 3, ic), jnp.float32),
        b_dw=0.1 * jax.random.normal(k2, (ic,), jnp.float32),
        w_pw=jax.random.normal(k3, (ic, oc), jnp.float32) / jnp.sqrt(float(ic)),
        b_pw=0.1 * jax.random.normal(k4, (oc,), jnp.float32),
        gamma=1.0 + 0.1 * jax.random.normal(k5, (oc,), jnp.float32),
        beta=0.1 * jax.random.normal(k6, (oc,), jnp.float32))


def _init_short(key, ic, oc):
    k1, k2, k3, k4 = jax.random.split(key, 4)
    return dict(
        w=jax.random.normal(k1, (ic, oc), jnp.float32) / jnp.sqrt(float(ic)),
        b=0.1 * jax.random.normal(k2, (oc,), jnp.float32),
        gamma=1.0 + 0.1 * jax.random.normal(k3, (oc,), jnp.float32),
        beta=0.1 * jax.random.normal(k4, (oc,), jnp.float32))


def init_body_params(key, stem_channels):
    unit = stem_channels * 4
    cfgs = [("xblock", stem_channels, stem_channels * 2, 2),
            ("xblock", stem_channels * 2, unit, 2),
            ("xblock", unit, unit * 3, 2)]
    cfgs += [("xblock", unit * 3, unit * 3, 1)] * 16
    cfgs += [("xblock", unit * 3, unit * 4, 2),
             ("sep", unit * 4, unit * 6, 1),
             ("sep", unit * 6, unit * 6, 1),
             ("sep", unit * 6, unit * 8, 1)]
    params = []
    for kind, ic, oc, st in cfgs:
        if kind == "xblock":
            key, k1, k2, k3, k4 = jax.random.split(key, 5)
            p = dict(sep1=_init_sep(k1, ic, oc), sep2=_init_sep(k2, oc, oc),
                     sep3=_init_sep(k3, oc, oc))
            need_short = ic != oc
            if need_short:
                p["short"] = _init_short(k4, ic, oc)
            params.append((kind, dict(in_c=ic, out_c=oc, stride=st,
                                      need_short=need_short), p))
        else:
            key, k1 = jax.random.split(key)
            params.append((kind, dict(in_c=ic, out_c=oc, stride=st),
                           _init_sep(k1, ic, oc)))
    return params


def _ref_bn(x, gamma, beta):
    mean = jnp.mean(x, axis=(0, 1, 2), keepdims=True)
    var = jnp.mean(jnp.square(x - mean), axis=(0, 1, 2), keepdims=True)
    return (x - mean) * lax.rsqrt(var + EPS) * gamma + beta


def _ref_sep(x, p, stride, act):
    c = x.shape[-1]
    z = lax.conv_general_dilated(
        x, p["w_dw"].reshape(3, 3, 1, c), (stride, stride), ((1, 1), (1, 1)),
        dimension_numbers=("NHWC", "HWIO", "NHWC"),
        feature_group_count=c) + p["b_dw"]
    y = jnp.einsum("nhwc,cd->nhwd", z, p["w_pw"]) + p["b_pw"]
    y = _ref_bn(y, p["gamma"], p["beta"])
    return jnp.maximum(y, 0.0) if act else y


def _ref_short(x, p):
    y = jnp.einsum("nhwc,cd->nhwd", x[:, ::2, ::2, :], p["w"]) + p["b"]
    return _ref_bn(y, p["gamma"], p["beta"])


def _ref_block(x, p, stride, need_short):
    h = _ref_sep(x, p["sep1"], 1, True)
    h = _ref_sep(h, p["sep2"], 1, True)
    h = _ref_sep(h, p["sep3"], stride, False)
    sc = _ref_short(x, p["short"]) if need_short else x
    return jnp.maximum(h + sc, 0.0)


def ref_xception_body(x_nchw, body_params):
    x = jnp.transpose(x_nchw, (0, 2, 3, 1)).astype(jnp.float32)
    for kind, cfg, p in body_params:
        if kind == "xblock":
            x = _ref_block(x, p, cfg["stride"], cfg["need_short"])
        else:
            x = _ref_sep(x, p, 1, True)
    return jnp.transpose(x, (0, 3, 1, 2))


# ------------------------------------------------------------------------- driver
if __name__ == "__main__":
    key = jax.random.PRNGKey(0)
    kx, kp = jax.random.split(key)

    N, STEM, H, W = 2, 4, 16, 16          # x: (batch, stem_channels, H, W) NCHW
    x = jax.random.normal(kx, (N, STEM, H, W), jnp.float32)
    body_params = init_body_params(kp, STEM)

    out = jax.block_until_ready(pallas_xception_body(x, body_params))
    ref = ref_xception_body(x, body_params)

    assert out.shape == (N, STEM * 32, 1, 1), out.shape
    err = float(jnp.max(jnp.abs(out - ref)))
    if not err < 5e-2:
        raise AssertionError(f"mismatch vs reference: max abs err {err}")
    print("KERNEL_OK")
</pallas_src>

<mosaic_0001>
module attributes {stable_mosaic.version = 11 : i64} {
  func.func @kernel(%arg0: i32, %arg1: memref<1x18x18x128xf32, #tpu.memory_space<vmem>>, %arg2: memref<9x128xf32, #tpu.memory_space<vmem>>, %arg3: memref<1x128xf32, #tpu.memory_space<vmem>>, %arg4: memref<1x16x16x128xf32, #tpu.memory_space<vmem>>) attributes {dimension_semantics = [#tpu.dimension_semantics<parallel>], iteration_bounds = array<i64: 2>, scalar_prefetch = 0 : i64, scratch_operands = 0 : i64, tpu.core_type = #tpu.core_type<tc>, window_params = [{transform_indices = @transform_0, window_bounds = array<i64: 1, 18, 18, 128>}, {pipeline_mode = #tpu.pipeline_mode<synchronous>, transform_indices = @transform_1, window_bounds = array<i64: 9, 128>}, {pipeline_mode = #tpu.pipeline_mode<synchronous>, transform_indices = @transform_2, window_bounds = array<i64: 1, 128>}, {transform_indices = @transform_3, window_bounds = array<i64: 1, 16, 16, 128>}]} {
    %cst = arith.constant 0.000000e+00 : f32
    %0 = vector.broadcast %cst : f32 to vector<16x16x128xf32>
    %c0 = arith.constant 0 : index
    %c0_0 = arith.constant 0 : index
    %1 = vector.load %arg3[%c0, %c0_0] : memref<1x128xf32, #tpu.memory_space<vmem>>, vector<1x128xf32>
    %2 = vector.shape_cast %1 : vector<1x128xf32> to vector<128xf32>
    %3 = vector.shape_cast %2 : vector<128xf32> to vector<1x1x128xf32>
    %4 = vector.broadcast %3 : vector<1x1x128xf32> to vector<16x16x128xf32>
    %5 = arith.addf %0, %4 : vector<16x16x128xf32>
    %c0_1 = arith.constant 0 : index
    %c0_2 = arith.constant 0 : index
    %c0_3 = arith.constant 0 : index
    %c0_4 = arith.constant 0 : index
    %6 = vector.load %arg4[%c0_1, %c0_2, %c0_3, %c0_4] : memref<1x16x16x128xf32, #tpu.memory_space<vmem>>, vector<1x16x16x128xf32>
    %7 = vector.shape_cast %6 : vector<1x16x16x128xf32> to vector<16x16x128xf32>
    %8 = vector.shape_cast %5 : vector<16x16x128xf32> to vector<1x16x16x128xf32>
    tpu.vector_store %arg4[%c0_1, %c0_2, %c0_3, %c0_4], %8 {strides = array<i32>} : memref<1x16x16x128xf32, #tpu.memory_space<vmem>>, vector<1x16x16x128xf32>,
    %c0_5 = arith.constant 0 : index
    %c0_6 = arith.constant 0 : index
    %c0_7 = arith.constant 0 : index
    %c0_8 = arith.constant 0 : index
    %9 = vector.load %arg4[%c0_5, %c0_6, %c0_7, %c0_8] : memref<1x16x16x128xf32, #tpu.memory_space<vmem>>, vector<1x16x16x128xf32>
    %10 = vector.shape_cast %9 : vector<1x16x16x128xf32> to vector<16x16x128xf32>
    %c0_9 = arith.constant 0 : index
    %c0_10 = arith.constant 0 : index
    %c0_11 = arith.constant 0 : index
    %c0_12 = arith.constant 0 : index
    %11 = vector.load %arg1[%c0_9, %c0_10, %c0_11, %c0_12] : memref<1x18x18x128xf32, #tpu.memory_space<vmem>>, vector<1x16x16x128xf32>
    %12 = vector.shape_cast %11 : vector<1x16x16x128xf32> to vector<16x16x128xf32>
    %c0_13 = arith.constant 0 : index
    %c0_14 = arith.constant 0 : index
    %13 = vector.load %arg2[%c0_13, %c0_14] : memref<9x128xf32, #tpu.memory_space<vmem>>, vector<1x128xf32>
    %14 = vector.shape_cast %13 : vector<1x128xf32> to vector<128xf32>
    %15 = vector.shape_cast %14 : vector<128xf32> to vector<1x1x128xf32>
    %16 = vector.broadcast %15 : vector<1x1x128xf32> to vector<16x16x128xf32>
    %17 = arith.mulf %12, %16 : vector<16x16x128xf32>
    %18 = arith.addf %10, %17 : vector<16x16x128xf32>
    %c0_15 = arith.constant 0 : index
    %c0_16 = arith.constant 0 : index
    %c0_17 = arith.constant 0 : index
    %c0_18 = arith.constant 0 : index
    %19 = vector.load %arg4[%c0_15, %c0_16, %c0_17, %c0_18] : memref<1x16x16x128xf32, #tpu.memory_space<vmem>>, vector<1x16x16x128xf32>
    %20 = vector.shape_cast %19 : vector<1x16x16x128xf32> to vector<16x16x128xf32>
    %21 = vector.shape_cast %18 : vector<16x16x128xf32> to vector<1x16x16x128xf32>
    tpu.vector_store %arg4[%c0_15, %c0_16, %c0_17, %c0_18], %21 {strides = array<i32>} : memref<1x16x16x128xf32, #tpu.memory_space<vmem>>, vector<1x16x16x128xf32>,
    %c0_19 = arith.constant 0 : index
    %c0_20 = arith.constant 0 : index
    %c0_21 = arith.constant 0 : index
    %c0_22 = arith.constant 0 : index
    %22 = vector.load %arg4[%c0_19, %c0_20, %c0_21, %c0_22] : memref<1x16x16x128xf32, #tpu.memory_space<vmem>>, vector<1x16x16x128xf32>
    %23 = vector.shape_cast %22 : vector<1x16x16x128xf32> to vector<16x16x128xf32>
    %c0_23 = arith.constant 0 : index
    %c0_24 = arith.constant 0 : index
    %c1 = arith.constant 1 : index
    %c0_25 = arith.constant 0 : index
    %24 = vector.load %arg1[%c0_23, %c0_24, %c1, %c0_25] : memref<1x18x18x128xf32, #tpu.memory_space<vmem>>, vector<1x16x16x128xf32>
    %25 = vector.shape_cast %24 : vector<1x16x16x128xf32> to vector<16x16x128xf32>
    %c1_26 = arith.constant 1 : index
    %c0_27 = arith.constant 0 : index
    %26 = vector.load %arg2[%c1_26, %c0_27] : memref<9x128xf32, #tpu.memory_space<vmem>>, vector<1x128xf32>
    %27 = vector.shape_cast %26 : vector<1x128xf32> to vector<128xf32>
    %28 = vector.shape_cast %27 : vector<128xf32> to vector<1x1x128xf32>
    %29 = vector.broadcast %28 : vector<1x1x128xf32> to vector<16x16x128xf32>
    %30 = arith.mulf %25, %29 : vector<16x16x128xf32>
    %31 = arith.addf %23, %30 : vector<16x16x128xf32>
    %c0_28 = arith.constant 0 : index
    %c0_29 = arith.constant 0 : index
    %c0_30 = arith.constant 0 : index
    %c0_31 = arith.constant 0 : index
    %32 = vector.load %arg4[%c0_28, %c0_29, %c0_30, %c0_31] : memref<1x16x16x128xf32, #tpu.memory_space<vmem>>, vector<1x16x16x128xf32>
    %33 = vector.shape_cast %32 : vector<1x16x16x128xf32> to vector<16x16x128xf32>
    %34 = vector.shape_cast %31 : vector<16x16x128xf32> to vector<1x16x16x128xf32>
    tpu.vector_store %arg4[%c0_28, %c0_29, %c0_30, %c0_31], %34 {strides = array<i32>} : memref<1x16x16x128xf32, #tpu.memory_space<vmem>>, vector<1x16x16x128xf32>,
    %c0_32 = arith.constant 0 : index
    %c0_33 = arith.constant 0 : index
    %c0_34 = arith.constant 0 : index
    %c0_35 = arith.constant 0 : index
    %35 = vector.load %arg4[%c0_32, %c0_33, %c0_34, %c0_35] : memref<1x16x16x128xf32, #tpu.memory_space<vmem>>, vector<1x16x16x128xf32>
    %36 = vector.shape_cast %35 : vector<1x16x16x128xf32> to vector<16x16x128xf32>
    %c0_36 = arith.constant 0 : index
    %c0_37 = arith.constant 0 : index
    %c2 = arith.constant 2 : index
    %c0_38 = arith.constant 0 : index
    %37 = vector.load %arg1[%c0_36, %c0_37, %c2, %c0_38] : memref<1x18x18x128xf32, #tpu.memory_space<vmem>>, vector<1x16x16x128xf32>
    %38 = vector.shape_cast %37 : vector<1x16x16x128xf32> to vector<16x16x128xf32>
    %c2_39 = arith.constant 2 : index
    %c0_40 = arith.constant 0 : index
    %39 = vector.load %arg2[%c2_39, %c0_40] : memref<9x128xf32, #tpu.memory_space<vmem>>, vector<1x128xf32>
    %40 = vector.shape_cast %39 : vector<1x128xf32> to vector<128xf32>
    %41 = vector.shape_cast %40 : vector<128xf32> to vector<1x1x128xf32>
    %42 = vector.broadcast %41 : vector<1x1x128xf32> to vector<16x16x128xf32>
    %43 = arith.mulf %38, %42 : vector<16x16x128xf32>
    %44 = arith.addf %36, %43 : vector<16x16x128xf32>
    %c0_41 = arith.constant 0 : index
    %c0_42 = arith.constant 0 : index
    %c0_43 = arith.constant 0 : index
    %c0_44 = arith.constant 0 : index
    %45 = vector.load %arg4[%c0_41, %c0_42, %c0_43, %c0_44] : memref<1x16x16x128xf32, #tpu.memory_space<vmem>>, vector<1x16x16x128xf32>
    %46 = vector.shape_cast %45 : vector<1x16x16x128xf32> to vector<16x16x128xf32>
    %47 = vector.shape_cast %44 : vector<16x16x128xf32> to vector<1x16x16x128xf32>
    tpu.vector_store %arg4[%c0_41, %c0_42, %c0_43, %c0_44], %47 {strides = array<i32>} : memref<1x16x16x128xf32, #tpu.memory_space<vmem>>, vector<1x16x16x128xf32>,
    %c0_45 = arith.constant 0 : index
    %c0_46 = arith.constant 0 : index
    %c0_47 = arith.constant 0 : index
    %c0_48 = arith.constant 0 : index
    %48 = vector.load %arg4[%c0_45, %c0_46, %c0_47, %c0_48] : memref<1x16x16x128xf32, #tpu.memory_space<vmem>>, vector<1x16x16x128xf32>
    %49 = vector.shape_cast %48 : vector<1x16x16x128xf32> to vector<16x16x128xf32>
    %c0_49 = arith.constant 0 : index
    %c1_50 = arith.constant 1 : index
    %c0_51 = arith.constant 0 : index
    %c0_52 = arith.constant 0 : index
    %50 = vector.load %arg1[%c0_49, %c1_50, %c0_51, %c0_52] : memref<1x18x18x128xf32, #tpu.memory_space<vmem>>, vector<1x16x16x128xf32>
    %51 = vector.shape_cast %50 : vector<1x16x16x128xf32> to vector<16x16x128xf32>
    %c3 = arith.constant 3 : index
    %c0_53 = arith.constant 0 : index
    %52 = vector.load %arg2[%c3, %c0_53] : memref<9x128xf32, #tpu.memory_space<vmem>>, vector<1x128xf32>
    %53 = vector.shape_cast %52 : vector<1x128xf32> to vector<128xf32>
    %54 = vector.shape_cast %53 : vector<128xf32> to vector<1x1x128xf32>
    %55 = vector.broadcast %54 : vector<1x1x128xf32> to vector<16x16x128xf32>
    %56 = arith.mulf %51, %55 : vector<16x16x128xf32>
    %57 = arith.addf %49, %56 : vector<16x16x128xf32>
    %c0_54 = arith.constant 0 : index
    %c0_55 = arith.constant 0 : index
    %c0_56 = arith.constant 0 : index
    %c0_57 = arith.constant 0 : index
    %58 = vector.load %arg4[%c0_54, %c0_55, %c0_56, %c0_57] : memref<1x16x16x128xf32, #tpu.memory_space<vmem>>, vector<1x16x16x128xf32>
    %59 = vector.shape_cast %58 : vector<1x16x16x128xf32> to vector<16x16x128xf32>
    %60 = vector.shape_cast %57 : vector<16x16x128xf32> to vector<1x16x16x128xf32>
    tpu.vector_store %arg4[%c0_54, %c0_55, %c0_56, %c0_57], %60 {strides = array<i32>} : memref<1x16x16x128xf32, #tpu.memory_space<vmem>>, vector<1x16x16x128xf32>,
    %c0_58 = arith.constant 0 : index
    %c0_59 = arith.constant 0 : index
    %c0_60 = arith.constant 0 : index
    %c0_61 = arith.constant 0 : index
    %61 = vector.load %arg4[%c0_58, %c0_59, %c0_60, %c0_61] : memref<1x16x16x128xf32, #tpu.memory_space<vmem>>, vector<1x16x16x128xf32>
    %62 = vector.shape_cast %61 : vector<1x16x16x128xf32> to vector<16x16x128xf32>
    %c0_62 = arith.constant 0 : index
    %c1_63 = arith.constant 1 : index
    %c1_64 = arith.constant 1 : index
    %c0_65 = arith.constant 0 : index
    %63 = vector.load %arg1[%c0_62, %c1_63, %c1_64, %c0_65] : memref<1x18x18x128xf32, #tpu.memory_space<vmem>>, vector<1x16x16x128xf32>
    %64 = vector.shape_cast %63 : vector<1x16x16x128xf32> to vector<16x16x128xf32>
    %c4 = arith.constant 4 : index
    %c0_66 = arith.constant 0 : index
    %65 = vector.load %arg2[%c4, %c0_66] : memref<9x128xf32, #tpu.memory_space<vmem>>, vector<1x128xf32>
    %66 = vector.shape_cast %65 : vector<1x128xf32> to vector<128xf32>
    %67 = vector.shape_cast %66 : vector<128xf32> to vector<1x1x128xf32>
    %68 = vector.broadcast %67 : vector<1x1x128xf32> to vector<16x16x128xf32>
    %69 = arith.mulf %64, %68 : vector<16x16x128xf32>
    %70 = arith.addf %62, %69 : vector<16x16x128xf32>
    %c0_67 = arith.constant 0 : index
    %c0_68 = arith.constant 0 : index
    %c0_69 = arith.constant 0 : index
    %c0_70 = arith.constant 0 : index
    %71 = vector.load %arg4[%c0_67, %c0_68, %c0_69, %c0_70] : memref<1x16x16x128xf32, #tpu.memory_space<vmem>>, vector<1x16x16x128xf32>
    %72 = vector.shape_cast %71 : vector<1x16x16x128xf32> to vector<16x16x128xf32>
    %73 = vector.shape_cast %70 : vector<16x16x128xf32> to vector<1x16x16x128xf32>
    tpu.vector_store %arg4[%c0_67, %c0_68, %c0_69, %c0_70], %73 {strides = array<i32>} : memref<1x16x16x128xf32, #tpu.memory_space<vmem>>, vector<1x16x16x128xf32>,
    %c0_71 = arith.constant 0 : index
    %c0_72 = arith.constant 0 : index
    %c0_73 = arith.constant 0 : index
    %c0_74 = arith.constant 0 : index
    %74 = vector.load %arg4[%c0_71, %c0_72, %c0_73, %c0_74] : memref<1x16x16x128xf32, #tpu.memory_space<vmem>>, vector<1x16x16x128xf32>
    %75 = vector.shape_cast %74 : vector<1x16x16x128xf32> to vector<16x16x128xf32>
    %c0_75 = arith.constant 0 : index
    %c1_76 = arith.constant 1 : index
    %c2_77 = arith.constant 2 : index
    %c0_78 = arith.constant 0 : index
    %76 = vector.load %arg1[%c0_75, %c1_76, %c2_77, %c0_78] : memref<1x18x18x128xf32, #tpu.memory_space<vmem>>, vector<1x16x16x128xf32>
    %77 = vector.shape_cast %76 : vector<1x16x16x128xf32> to vector<16x16x128xf32>
    %c5 = arith.constant 5 : index
    %c0_79 = arith.constant 0 : index
    %78 = vector.load %arg2[%c5, %c0_79] : memref<9x128xf32, #tpu.memory_space<vmem>>, vector<1x128xf32>
    %79 = vector.shape_cast %78 : vector<1x128xf32> to vector<128xf32>
    %80 = vector.shape_cast %79 : vector<128xf32> to vector<1x1x128xf32>
    %81 = vector.broadcast %80 : vector<1x1x128xf32> to vector<16x16x128xf32>
    %82 = arith.mulf %77, %81 : vector<16x16x128xf32>
    %83 = arith.addf %75, %82 : vector<16x16x128xf32>
    %c0_80 = arith.constant 0 : index
    %c0_81 = arith.constant 0 : index
    %c0_82 = arith.constant 0 : index
    %c0_83 = arith.constant 0 : index
    %84 = vector.load %arg4[%c0_80, %c0_81, %c0_82, %c0_83] : memref<1x16x16x128xf32, #tpu.memory_space<vmem>>, vector<1x16x16x128xf32>
    %85 = vector.shape_cast %84 : vector<1x16x16x128xf32> to vector<16x16x128xf32>
    %86 = vector.shape_cast %83 : vector<16x16x128xf32> to vector<1x16x16x128xf32>
    tpu.vector_store %arg4[%c0_80, %c0_81, %c0_82, %c0_83], %86 {strides = array<i32>} : memref<1x16x16x128xf32, #tpu.memory_space<vmem>>, vector<1x16x16x128xf32>,
    %c0_84 = arith.constant 0 : index
    %c0_85 = arith.constant 0 : index
    %c0_86 = arith.constant 0 : index
    %c0_87 = arith.constant 0 : index
    %87 = vector.load %arg4[%c0_84, %c0_85, %c0_86, %c0_87] : memref<1x16x16x128xf32, #tpu.memory_space<vmem>>, vector<1x16x16x128xf32>
    %88 = vector.shape_cast %87 : vector<1x16x16x128xf32> to vector<16x16x128xf32>
    %c0_88 = arith.constant 0 : index
    %c2_89 = arith.constant 2 : index
    %c0_90 = arith.constant 0 : index
    %c0_91 = arith.constant 0 : index
    %89 = vector.load %arg1[%c0_88, %c2_89, %c0_90, %c0_91] : memref<1x18x18x128xf32, #tpu.memory_space<vmem>>, vector<1x16x16x128xf32>
    %90 = vector.shape_cast %89 : vector<1x16x16x128xf32> to vector<16x16x128xf32>
    %c6 = arith.constant 6 : index
    %c0_92 = arith.constant 0 : index
    %91 = vector.load %arg2[%c6, %c0_92] : memref<9x128xf32, #tpu.memory_space<vmem>>, vector<1x128xf32>
    %92 = vector.shape_cast %91 : vector<1x128xf32> to vector<128xf32>
    %93 = vector.shape_cast %92 : vector<128xf32> to vector<1x1x128xf32>
    %94 = vector.broadcast %93 : vector<1x1x128xf32> to vector<16x16x128xf32>
    %95 = arith.mulf %90, %94 : vector<16x16x128xf32>
    %96 = arith.addf %88, %95 : vector<16x16x128xf32>
    %c0_93 = arith.constant 0 : index
    %c0_94 = arith.constant 0 : index
    %c0_95 = arith.constant 0 : index
    %c0_96 = arith.constant 0 : index
    %97 = vector.load %arg4[%c0_93, %c0_94, %c0_95, %c0_96] : memref<1x16x16x128xf32, #tpu.memory_space<vmem>>, vector<1x16x16x128xf32>
    %98 = vector.shape_cast %97 : vector<1x16x16x128xf32> to vector<16x16x128xf32>
    %99 = vector.shape_cast %96 : vector<16x16x128xf32> to vector<1x16x16x128xf32>
    tpu.vector_store %arg4[%c0_93, %c0_94, %c0_95, %c0_96], %99 {strides = array<i32>} : memref<1x16x16x128xf32, #tpu.memory_space<vmem>>, vector<1x16x16x128xf32>,
    %c0_97 = arith.constant 0 : index
    %c0_98 = arith.constant 0 : index
    %c0_99 = arith.constant 0 : index
    %c0_100 = arith.constant 0 : index
    %100 = vector.load %arg4[%c0_97, %c0_98, %c0_99, %c0_100] : memref<1x16x16x128xf32, #tpu.memory_space<vmem>>, vector<1x16x16x128xf32>
    %101 = vector.shape_cast %100 : vector<1x16x16x128xf32> to vector<16x16x128xf32>
    %c0_101 = arith.constant 0 : index
    %c2_102 = arith.constant 2 : index
    %c1_103 = arith.constant 1 : index
    %c0_104 = arith.constant 0 : index
    %102 = vector.load %arg1[%c0_101, %c2_102, %c1_103, %c0_104] : memref<1x18x18x128xf32, #tpu.memory_space<vmem>>, vector<1x16x16x128xf32>
    %103 = vector.shape_cast %102 : vector<1x16x16x128xf32> to vector<16x16x128xf32>
    %c7 = arith.constant 7 : index
    %c0_105 = arith.constant 0 : index
    %104 = vector.load %arg2[%c7, %c0_105] : memref<9x128xf32, #tpu.memory_space<vmem>>, vector<1x128xf32>
    %105 = vector.shape_cast %104 : vector<1x128xf32> to vector<128xf32>
    %106 = vector.shape_cast %105 : vector<128xf32> to vector<1x1x128xf32>
    %107 = vector.broadcast %106 : vector<1x1x128xf32> to vector<16x16x128xf32>
    %108 = arith.mulf %103, %107 : vector<16x16x128xf32>
    %109 = arith.addf %101, %108 : vector<16x16x128xf32>
    %c0_106 = arith.constant 0 : index
    %c0_107 = arith.constant 0 : index
    %c0_108 = arith.constant 0 : index
    %c0_109 = arith.constant 0 : index
    %110 = vector.load %arg4[%c0_106, %c0_107, %c0_108, %c0_109] : memref<1x16x16x128xf32, #tpu.memory_space<vmem>>, vector<1x16x16x128xf32>
    %111 = vector.shape_cast %110 : vector<1x16x16x128xf32> to vector<16x16x128xf32>
    %112 = vector.shape_cast %109 : vector<16x16x128xf32> to vector<1x16x16x128xf32>
    tpu.vector_store %arg4[%c0_106, %c0_107, %c0_108, %c0_109], %112 {strides = array<i32>} : memref<1x16x16x128xf32, #tpu.memory_space<vmem>>, vector<1x16x16x128xf32>,
    %c0_110 = arith.constant 0 : index
    %c0_111 = arith.constant 0 : index
    %c0_112 = arith.constant 0 : index
    %c0_113 = arith.constant 0 : index
    %113 = vector.load %arg4[%c0_110, %c0_111, %c0_112, %c0_113] : memref<1x16x16x128xf32, #tpu.memory_space<vmem>>, vector<1x16x16x128xf32>
    %114 = vector.shape_cast %113 : vector<1x16x16x128xf32> to vector<16x16x128xf32>
    %c0_114 = arith.constant 0 : index
    %c2_115 = arith.constant 2 : index
    %c2_116 = arith.constant 2 : index
    %c0_117 = arith.constant 0 : index
    %115 = vector.load %arg1[%c0_114, %c2_115, %c2_116, %c0_117] : memref<1x18x18x128xf32, #tpu.memory_space<vmem>>, vector<1x16x16x128xf32>
    %116 = vector.shape_cast %115 : vector<1x16x16x128xf32> to vector<16x16x128xf32>
    %c8 = arith.constant 8 : index
    %c0_118 = arith.constant 0 : index
    %117 = vector.load %arg2[%c8, %c0_118] : memref<9x128xf32, #tpu.memory_space<vmem>>, vector<1x128xf32>
    %118 = vector.shape_cast %117 : vector<1x128xf32> to vector<128xf32>
    %119 = vector.shape_cast %118 : vector<128xf32> to vector<1x1x128xf32>
    %120 = vector.broadcast %119 : vector<1x1x128xf32> to vector<16x16x128xf32>
    %121 = arith.mulf %116, %120 : vector<16x16x128xf32>
    %122 = arith.addf %114, %121 : vector<16x16x128xf32>
    %c0_119 = arith.constant 0 : index
    %c0_120 = arith.constant 0 : index
    %c0_121 = arith.constant 0 : index
    %c0_122 = arith.constant 0 : index
    %123 = vector.load %arg4[%c0_119, %c0_120, %c0_121, %c0_122] : memref<1x16x16x128xf32, #tpu.memory_space<vmem>>, vector<1x16x16x128xf32>
    %124 = vector.shape_cast %123 : vector<1x16x16x128xf32> to vector<16x16x128xf32>
    %125 = vector.shape_cast %122 : vector<16x16x128xf32> to vector<1x16x16x128xf32>
    tpu.vector_store %arg4[%c0_119, %c0_120, %c0_121, %c0_122], %125 {strides = array<i32>} : memref<1x16x16x128xf32, #tpu.memory_space<vmem>>, vector<1x16x16x128xf32>,
    return
  }
  func.func @transform_0(%arg0: i32) -> (i32, i32, i32, i32) {
    %c0_i32 = arith.constant 0 : i32
    %c0_i32_0 = arith.constant 0 : i32
    %c0_i32_1 = arith.constant 0 : i32
    %c0_i32_2 = arith.constant 0 : i32
    return %arg0, %c0_i32, %c0_i32_0, %c0_i32_1 : i32, i32, i32, i32
  }
  func.func @transform_1(%arg0: i32) -> (i32, i32) {
    %c0_i32 = arith.constant 0 : i32
    %c0_i32_0 = arith.constant 0 : i32
    %c0_i32_1 = arith.constant 0 : i32
    return %c0_i32, %c0_i32_0 : i32, i32
  }
  func.func @transform_2(%arg0: i32) -> (i32, i32) {
    %c0_i32 = arith.constant 0 : i32
    %c0_i32_0 = arith.constant 0 : i32
    %c0_i32_1 = arith.constant 0 : i32
    return %c0_i32, %c0_i32_0 : i32, i32
  }
  func.func @transform_3(%arg0: i32) -> (i32, i32, i32, i32) {
    %c0_i32 = arith.constant 0 : i32
    %c0_i32_0 = arith.constant 0 : i32
    %c0_i32_1 = arith.constant 0 : i32
    %c0_i32_2 = arith.constant 0 : i32
    return %arg0, %c0_i32, %c0_i32_0, %c0_i32_1 : i32, i32, i32, i32
  }
}

</mosaic_0001>

<llo_original>
// kernel: tpu_custom_call.1
$region0: #{tpu_custom_call.1}
  #allocation0 [shape = 'u32[]', space=smem, size = 0x4, offset = 0x4, fixed_abs, tag = 'smem constant byte address 0x4 - core index']
  #allocation1 [shape = 'u32[144,128]{1,0:T(1,128)}', space=vmem, size = 0x12000, scoped, tag = 'internal scratch']
  %s0 = inlined_call_operand.vmem [shape: f32[2,18,18,128], index: 0, kind: input, shape index: {}]
  %s1 = inlined_call_operand.vmem [shape: f32[9,128], index: 1, kind: input, shape index: {}]
  %s2 = inlined_call_operand.vmem [shape: f32[1,128], index: 2, kind: input, shape index: {}]
  %s3 = inlined_call_operand.hbm [shape: f32[2,16,16,128], index: 3, kind: output, shape index: {}]
  %s4 = sld [smem:[#allocation0]]
  $region45: #{tpu_custom_call.1} parent=0
    _
  %s6 = ssub.s32 1, %s4
  %s7 = scalar_select 0, %s6, %s4
  $region1: #{tpu_custom_call.1} parent=0
    #allocation2 [shape = 'u8[262144]{0}', space=vmem, size = 0x40000, scoped, tag = 'output window, operand 0']
    #allocation3 [shape = 's32[2]{0}', space=sflag, size = 0x8, scoped, tag = 'scoped memory for tpu_custom_call.1']
    %8 = vsyncpa [#allocation3], 0
    %s9 = scalar_lea.sflag [#allocation3], 1
    %10 = vsyncpa %s9, 0
    loop: start=0, step=1, limit=4
    $region2: #{tpu_custom_call.1} parent=1 // loop_pre_header
      _
    $region3: #{tpu_custom_call.1} parent=1 // loop_header
      %s12 = sphi 0, %s16
      %p13 = scmp.ge.s32.totalorder %s12, 4
      %s22 = sphi 0, %s24
      %s25 = sphi 0, %s22
      %s26 = sphi 0, %s25
      %s42 = sphi 0, %s26
      %s46 = sphi 0, %s46
      %s48 = sphi 0, %s46
      %s49 = sphi 0, %s48
      %s63 = sphi 0, %s49
      %s67 = sphi 0, %s67
      %s69 = sphi 0, %s67
      %s70 = sphi 0, %s69
      %s84 = sphi 0, %s70
      %s90 = sphi 0, %s92
      %s93 = sphi 0, %s90
      %s94 = sphi 0, %s93
      %s110 = sphi 0, %s94
    $region4: #{tpu_custom_call.1} parent=1 // loop_header_branch
      %15 = sbr.rel (%p13) target = $region8
    $region5: #{tpu_custom_call.1} parent=1 // loop_body
      %s17 = ssub.s32 %s12, 1
      %s18 = ssub.s32 %s12, 2
      %s19 = sadd.s32 %s12, 1
      %s20 = ssub.s32 %s12, %s19
      %p21 = scmp.eq.s32.totalorder %s20, 0
      %s23 = sadd.s32 %s22, 1
      %s24 = scalar_select %p21, %s22, %s23
      %p27 = pneg %p21
      %p28 = scmp.eq.s32.totalorder %s12, 1
      %p29 = por %p27, %p28
      %p30 = scmp.ne.s32.totalorder %s22, %s25
      %p31 = scmp.eq.s32.totalorder %s12, 0
      %p32 = por %p30, %p31
      %p33 = scmp.ne.s32.totalorder %s22, %s25
      %p34 = scmp.eq.s32.totalorder %s17, 1
      %p35 = por %p33, %p34
      %p36 = scmp.ne.s32.totalorder %s25, %s26
      %p37 = scmp.eq.s32.totalorder %s17, 0
      %p38 = por %p36, %p37
      %p39 = scmp.ne.s32.totalorder %s25, %s26
      %p40 = scmp.eq.s32.totalorder %s18, 1
      %p41 = por %p39, %p40
      %p43 = scmp.ne.s32.totalorder %s26, %s42
      %p44 = scmp.eq.s32.totalorder %s18, 0
      %p45 = por %p43, %p44
      %s47 = sadd.s32 %s46, 1
      %p50 = scmp.eq.s32.totalorder %s12, 1
      %p51 = scmp.ne.s32.totalorder %s46, %s48
      %p52 = scmp.eq.s32.totalorder %s12, 0
      %p53 = por %p51, %p52
      %p54 = scmp.ne.s32.totalorder %s46, %s48
      %p55 = scmp.eq.s32.totalorder %s17, 1
      %p56 = por %p54, %p55
      %p57 = scmp.ne.s32.totalorder %s48, %s49
      %p58 = scmp.eq.s32.totalorder %s17, 0
      %p59 = por %p57, %p58
      %p60 = scmp.ne.s32.totalorder %s48, %s49
      %p61 = scmp.eq.s32.totalorder %s18, 1
      %p62 = por %p60, %p61
      %p64 = scmp.ne.s32.totalorder %s49, %s63
      %p65 = scmp.eq.s32.totalorder %s18, 0
      %p66 = por %p64, %p65
      %s68 = sadd.s32 %s67, 1
      %p71 = scmp.eq.s32.totalorder %s12, 1
      %p72 = scmp.ne.s32.totalorder %s67, %s69
      %p73 = scmp.eq.s32.totalorder %s12, 0
      %p74 = por %p72, %p73
      %p75 = scmp.ne.s32.totalorder %s67, %s69
      %p76 = scmp.eq.s32.totalorder %s17, 1
      %p77 = por %p75, %p76
      %p78 = scmp.ne.s32.totalorder %s69, %s70
      %p79 = scmp.eq.s32.totalorder %s17, 0
      %p80 = por %p78, %p79
      %p81 = scmp.ne.s32.totalorder %s69, %s70
      %p82 = scmp.eq.s32.totalorder %s18, 1
      %p83 = por %p81, %p82
      %p85 = scmp.ne.s32.totalorder %s70, %s84
      %p86 = scmp.eq.s32.totalorder %s18, 0
      %p87 = por %p85, %p86
      %s88 = ssub.s32 %s12, %s19
      %p89 = scmp.eq.s32.totalorder %s88, 0
      %s91 = sadd.s32 %s90, 1
      %s92 = scalar_select %p89, %s90, %s91
      %p95 = pneg %p89
      %p96 = scmp.eq.s32.totalorder %s12, 1
      %p97 = por %p95, %p96
      %p98 = scmp.ne.s32.totalorder %s90, %s93
      %p99 = scmp.eq.s32.totalorder %s12, 0
      %p100 = por %p98, %p99
      %p101 = scmp.ne.s32.totalorder %s90, %s93
      %p102 = scmp.eq.s32.totalorder %s17, 1
      %p103 = por %p101, %p102
      %p104 = scmp.ne.s32.totalorder %s93, %s94
      %p105 = scmp.eq.s32.totalorder %s17, 0
      %p106 = por %p104, %p105
      %p107 = scmp.ne.s32.totalorder %s93, %s94
      %p108 = scmp.eq.s32.totalorder %s18, 1
      %p109 = por %p107, %p108
      %p111 = scmp.ne.s32.totalorder %s94, %s110
      %p112 = scmp.eq.s32.totalorder %s18, 0
      %p113 = por %p111, %p112
      %p114 = scmp.le.s32.totalorder 1, %s12
      %p115 = scmp.lt.s32.totalorder %s12, 3
      %p116 = pnand %p114, %p115
      %p117 = pneg %p116
      // Predicated region
      $region9: #{tpu_custom_call.1} parent=5 // pred_check
        _
      $region10: #{tpu_custom_call.1} parent=5 // pred_check_branch
        %119 = sbr.rel (%p116) target = $region12
      $region11: #{tpu_custom_call.1} parent=5 // pred_region
        %s120 = ssub.s32 %s12, 1
        // Predicated region
        $region13: #{tpu_custom_call.1} parent=11 // pred_check
          %p121 = pneg %p59
        $region14: #{tpu_custom_call.1} parent=11 // pred_check_branch
          %123 = sbr.rel (%p121) target = $region16
        $region15: #{tpu_custom_call.1} parent=11 // pred_region
          _
        $region16: #{tpu_custom_call.1} parent=11 // pred_fallthru
          _
        // Predicated region
        $region17: #{tpu_custom_call.1} parent=11 // pred_check
          %p124 = pneg %p80
        $region18: #{tpu_custom_call.1} parent=11 // pred_check_branch
          %126 = sbr.rel (%p124) target = $region20
        $region19: #{tpu_custom_call.1} parent=11 // pred_region
          _
        $region20: #{tpu_custom_call.1} parent=11 // pred_fallthru
          _
      $region12: #{tpu_custom_call.1} parent=5 // pred_fallthru
        _
      %p127 = scmp.lt.s32.totalorder %s12, 2
      // Predicated region
      $region21: #{tpu_custom_call.1} parent=5 // pred_check
        %p128 = pneg %p127
      $region22: #{tpu_custom_call.1} parent=5 // pred_check_branch
        %130 = sbr.rel (%p128) target = $region24
      $region23: #{tpu_custom_call.1} parent=5 // pred_region
        // Predicated region
        $region25: #{tpu_custom_call.1} parent=23 // pred_check
          %p131 = pneg %p32
        $region26: #{tpu_custom_call.1} parent=23 // pred_check_branch
          %133 = sbr.rel (%p131) target = $region28
        $region27: #{tpu_custom_call.1} parent=23 // pred_region
          %p134 = scmp.lt.s32.totalorder %s12, 1
          %s135 = scalar_select %p134, %s12, 1
          %s136 = smul.addr %s135, 54
          %s137 = smul.addr %s136, 8
          %s138 = scalar_lea.vmem %s0, %s137
        $region28: #{tpu_custom_call.1} parent=23 // pred_fallthru
          _
      $region24: #{tpu_custom_call.1} parent=5 // pred_fallthru
        _
      %p139 = scmp.le.s32.totalorder 1, %s12
      %p140 = scmp.lt.s32.totalorder %s12, 3
      %p141 = pnand %p139, %p140
      %p142 = pneg %p141
      // Predicated region
      $region29: #{tpu_custom_call.1} parent=5 // pred_check
        _
      $region30: #{tpu_custom_call.1} parent=5 // pred_check_branch
        %144 = sbr.rel (%p141) target = $region32
      $region31: #{tpu_custom_call.1} parent=5 // pred_region
        %s145 = ssub.s32 %s12, 1
        %p146 = scmp.lt.s32.totalorder %s17, 1
        %s147 = scalar_select %p146, %s17, 1
        %s148 = smul.addr %s147, 54
        %s149 = smul.addr %s148, 8
        %s150 = scalar_lea.vmem %s0, %s149
        %p151 = pneg %p38
        %p152 = pneg %p35
        %p153 = pneg %p59
        %p154 = pneg %p56
        %p155 = pneg %p80
        %p156 = pneg %p77
        %p157 = pneg %p106
        %p158 = pneg %p103
        %s159 = sand.u32 %s93, 1
        %s160 = scalar_lea.sflag [#allocation3], %s159
        %s161 = sand.u32 %s93, 1
        %s162 = smul.addr %s161, 256
        %s163 = scalar_lea.vmem [#allocation2], %s162
        %p164 = scmp.lt.s32.totalorder %s17, 1
        %s165 = scalar_select %p164, %s17, 1
        %s166 = smul.addr %s165, 54
        %s167 = smul.addr %s166, 8
        %s168 = scalar_lea.vmem %s0, %s167
        %v169 = vld [vmem:[%s2] sm:$0x1]
        %v171 = vlaneseq
        %v172 = vshrl.u32 %v171, 7
        %v173 = vsub.s32 0, %v172
        %v174 = vrot.slane %v169, %v173
        %v176 = vadd.f32 %v174, 0.0
        %177 = vst [vmem:[%s163] sm:$0xff] %v176
        %178 = vst [vmem:[%s163 + $0x8] sm:$0xff] %v176
        %179 = vst [vmem:[%s163 + $0x10] sm:$0xff] %v176
        %180 = vst [vmem:[%s163 + $0x18] sm:$0xff] %v176
        %181 = vst [vmem:[%s163 + $0x20] sm:$0xff] %v176
        %182 = vst [vmem:[%s163 + $0x28] sm:$0xff] %v176
        %183 = vst [vmem:[%s163 + $0x30] sm:$0xff] %v176
        %184 = vst [vmem:[%s163 + $0x38] sm:$0xff] %v176
        %185 = vst [vmem:[%s163 + $0x40] sm:$0xff] %v176
        %186 = vst [vmem:[%s163 + $0x48] sm:$0xff] %v176
        %187 = vst [vmem:[%s163 + $0x50] sm:$0xff] %v176
        %188 = vst [vmem:[%s163 + $0x58] sm:$0xff] %v176
        %189 = vst [vmem:[%s163 + $0x60] sm:$0xff] %v176
        %190 = vst [vmem:[%s163 + $0x68] sm:$0xff] %v176
        %191 = vst [vmem:[%s163 + $0x70] sm:$0xff] %v176
        %192 = vst [vmem:[%s163 + $0x78] sm:$0xff] %v176
        %193 = vst [vmem:[%s163 + $0x80] sm:$0xff] %v176
        %194 = vst [vmem:[%s163 + $0x88] sm:$0xff] %v176
        %195 = vst [vmem:[%s163 + $0x90] sm:$0xff] %v176
        %196 = vst [vmem:[%s163 + $0x98] sm:$0xff] %v176
        %197 = vst [vmem:[%s163 + $0xa0] sm:$0xff] %v176
        %198 = vst [vmem:[%s163 + $0xa8] sm:$0xff] %v176
        %199 = vst [vmem:[%s163 + $0xb0] sm:$0xff] %v176
        %200 = vst [vmem:[%s163 + $0xb8] sm:$0xff] %v176
        %201 = vst [vmem:[%s163 + $0xc0] sm:$0xff] %v176
        %202 = vst [vmem:[%s163 + $0xc8] sm:$0xff] %v176
        %203 = vst [vmem:[%s163 + $0xd0] sm:$0xff] %v176
        %204 = vst [vmem:[%s163 + $0xd8] sm:$0xff] %v176
        %205 = vst [vmem:[%s163 + $0xe0] sm:$0xff] %v176
        %206 = vst [vmem:[%s163 + $0xe8] sm:$0xff] %v176
        %207 = vst [vmem:[%s163 + $0xf0] sm:$0xff] %v176
        %208 = vst [vmem:[%s163 + $0xf8] sm:$0xff] %v176
        %v209 = vld [vmem:[%s163] sm:$0xff]
        %v210 = vld [vmem:[%s163 + $0x8] sm:$0xff]
        %v211 = vld [vmem:[%s163 + $0x10] sm:$0xff]
        %v212 = vld [vmem:[%s163 + $0x18] sm:$0xff]
        %v213 = vld [vmem:[%s163 + $0x20] sm:$0xff]
        %v214 = vld [vmem:[%s163 + $0x28] sm:$0xff]
        %v215 = vld [vmem:[%s163 + $0x30] sm:$0xff]
        %v216 = vld [vmem:[%s163 + $0x38] sm:$0xff]
        %v217 = vld [vmem:[%s163 + $0x40] sm:$0xff]
        %v218 = vld [vmem:[%s163 + $0x48] sm:$0xff]
        %v219 = vld [vmem:[%s163 + $0x50] sm:$0xff]
        %v220 = vld [vmem:[%s163 + $0x58] sm:$0xff]
        %v221 = vld [vmem:[%s163 + $0x60] sm:$0xff]
        %v222 = vld [vmem:[%s163 + $0x68] sm:$0xff]
        %v223 = vld [vmem:[%s163 + $0x70] sm:$0xff]
        %v224 = vld [vmem:[%s163 + $0x78] sm:$0xff]
        %v225 = vld [vmem:[%s163 + $0x80] sm:$0xff]
        %v226 = vld [vmem:[%s163 + $0x88] sm:$0xff]
        %v227 = vld [vmem:[%s163 + $0x90] sm:$0xff]
        %v228 = vld [vmem:[%s163 + $0x98] sm:$0xff]
        %v229 = vld [vmem:[%s163 + $0xa0] sm:$0xff]
        %v230 = vld [vmem:[%s163 + $0xa8] sm:$0xff]
        %v231 = vld [vmem:[%s163 + $0xb0] sm:$0xff]
        %v232 = vld [vmem:[%s163 + $0xb8] sm:$0xff]
        %v233 = vld [vmem:[%s163 + $0xc0] sm:$0xff]
        %v234 = vld [vmem:[%s163 + $0xc8] sm:$0xff]
        %v235 = vld [vmem:[%s163 + $0xd0] sm:$0xff]
        %v236 = vld [vmem:[%s163 + $0xd8] sm:$0xff]
        %v237 = vld [vmem:[%s163 + $0xe0] sm:$0xff]
        %v238 = vld [vmem:[%s163 + $0xe8] sm:$0xff]
        %v239 = vld [vmem:[%s163 + $0xf0] sm:$0xff]
        %v240 = vld [vmem:[%s163 + $0xf8] sm:$0xff]
        %v241 = vld [vmem:[%s168] sm:$0xff]
        %v242 = vld [vmem:[%s168 + $0x8] sm:$0xff]
        %v243 = vld [vmem:[%s168 + $0x18] sm:$0xff]
        %v244 = vld [vmem:[%s168 + $0x20] sm:$0xff]
        %v245 = vld [vmem:[%s168 + $0x30] sm:$0xff]
        %v246 = vld [vmem:[%s168 + $0x38] sm:$0xff]
        %v247 = vld [vmem:[%s168 + $0x48] sm:$0xff]
        %v248 = vld [vmem:[%s168 + $0x50] sm:$0xff]
        %v249 = vld [vmem:[%s168 + $0x60] sm:$0xff]
        %v250 = vld [vmem:[%s168 + $0x68] sm:$0xff]
        %v251 = vld [vmem:[%s168 + $0x78] sm:$0xff]
        %v252 = vld [vmem:[%s168 + $0x80] sm:$0xff]
        %v253 = vld [vmem:[%s168 + $0x90] sm:$0xff]
        %v254 = vld [vmem:[%s168 + $0x98] sm:$0xff]
        %v255 = vld [vmem:[%s168 + $0xa8] sm:$0xff]
        %v256 = vld [vmem:[%s168 + $0xb0] sm:$0xff]
        %v257 = vld [vmem:[%s168 + $0xc0] sm:$0xff]
        %v258 = vld [vmem:[%s168 + $0xc8] sm:$0xff]
        %v259 = vld [vmem:[%s168 + $0xd8] sm:$0xff]
        %v260 = vld [vmem:[%s168 + $0xe0] sm:$0xff]
        %v261 = vld [vmem:[%s168 + $0xf0] sm:$0xff]
        %v262 = vld [vmem:[%s168 + $0xf8] sm:$0xff]
        %v263 = vld [vmem:[%s168 + $0x108] sm:$0xff]
        %v264 = vld [vmem:[%s168 + $0x110] sm:$0xff]
        %v265 = vld [vmem:[%s168 + $0x120] sm:$0xff]
        %v266 = vld [vmem:[%s168 + $0x128] sm:$0xff]
        %v267 = vld [vmem:[%s168 + $0x138] sm:$0xff]
        %v268 = vld [vmem:[%s168 + $0x140] sm:$0xff]
        %v269 = vld [vmem:[%s168 + $0x150] sm:$0xff]
        %v270 = vld [vmem:[%s168 + $0x158] sm:$0xff]
        %v271 = vld [vmem:[%s168 + $0x168] sm:$0xff]
        %v272 = vld [vmem:[%s168 + $0x170] sm:$0xff]
        %v273 = vld [vmem:[%s1] sm:$0x1]
        %v274 = vlaneseq
        %v275 = vshrl.u32 %v274, 7
        %v276 = vsub.s32 0, %v275
        %v277 = vrot.slane %v273, %v276
        %v278 = vmul.f32 %v241, %v277
        %v279 = vmul.f32 %v242, %v277
        %v280 = vmul.f32 %v243, %v277
        %v281 = vmul.f32 %v244, %v277
        %v282 = vmul.f32 %v245, %v277
        %v283 = vmul.f32 %v246, %v277
        %v284 = vmul.f32 %v247, %v277
        %v285 = vmul.f32 %v248, %v277
        %v286 = vmul.f32 %v249, %v277
        %v287 = vmul.f32 %v250, %v277
        %v288 = vmul.f32 %v251, %v277
        %v289 = vmul.f32 %v252, %v277
        %v290 = vmul.f32 %v253, %v277
        %v291 = vmul.f32 %v254, %v277
        %v292 = vmul.f32 %v255, %v277
        %v293 = vmul.f32 %v256, %v277
        %v294 = vmul.f32 %v257, %v277
        %v295 = vmul.f32 %v258, %v277
        %v296 = vmul.f32 %v259, %v277
        %v297 = vmul.f32 %v260, %v277
        %v298 = vmul.f32 %v261, %v277
        %v299 = vmul.f32 %v262, %v277
        %v300 = vmul.f32 %v263, %v277
        %v301 = vmul.f32 %v264, %v277
        %v302 = vmul.f32 %v265, %v277
        %v303 = vmul.f32 %v266, %v277
        %v304 = vmul.f32 %v267, %v277
        %v305 = vmul.f32 %v268, %v277
        %v306 = vmul.f32 %v269, %v277
        %v307 = vmul.f32 %v270, %v277
        %v308 = vmul.f32 %v271, %v277
        %v309 = vmul.f32 %v272, %v277
        %v310 = vadd.f32 %v209, %v278
        %v311 = vadd.f32 %v210, %v279
        %v312 = vadd.f32 %v211, %v280
        %v313 = vadd.f32 %v212, %v281
        %v314 = vadd.f32 %v213, %v282
        %v315 = vadd.f32 %v214, %v283
        %v316 = vadd.f32 %v215, %v284
        %v317 = vadd.f32 %v216, %v285
        %v318 = vadd.f32 %v217, %v286
        %v319 = vadd.f32 %v218, %v287
        %v320 = vadd.f32 %v219, %v288
        %v321 = vadd.f32 %v220, %v289
        %v322 = vadd.f32 %v221, %v290
        %v323 = vadd.f32 %v222, %v291
        %v324 = vadd.f32 %v223, %v292
        %v325 = vadd.f32 %v224, %v293
        %v326 = vadd.f32 %v225, %v294
        %v327 = vadd.f32 %v226, %v295
        %v328 = vadd.f32 %v227, %v296
        %v329 = vadd.f32 %v228, %v297
        %v330 = vadd.f32 %v229, %v298
        %v331 = vadd.f32 %v230, %v299
        %v332 = vadd.f32 %v231, %v300
        %v333 = vadd.f32 %v232, %v301
        %v334 = vadd.f32 %v233, %v302
        %v335 = vadd.f32 %v234, %v303
        %v336 = vadd.f32 %v235, %v304
        %v337 = vadd.f32 %v236, %v305
        %v338 = vadd.f32 %v237, %v306
        %v339 = vadd.f32 %v238, %v307
        %v340 = vadd.f32 %v239, %v308
        %v341 = vadd.f32 %v240, %v309
        %342 = vst [vmem:[%s163] sm:$0xff] %v310
        %343 = vst [vmem:[%s163 + $0x8] sm:$0xff] %v311
        %344 = vst [vmem:[%s163 + $0x10] sm:$0xff] %v312
        %345 = vst [vmem:[%s163 + $0x18] sm:$0xff] %v313
        %346 = vst [vmem:[%s163 + $0x20] sm:$0xff] %v314
        %347 = vst [vmem:[%s163 + $0x28] sm:$0xff] %v315
        %348 = vst [vmem:[%s163 + $0x30] sm:$0xff] %v316
        %349 = vst [vmem:[%s163 + $0x38] sm:$0xff] %v317
        %350 = vst [vmem:[%s163 + $0x40] sm:$0xff] %v318
        %351 = vst [vmem:[%s163 + $0x48] sm:$0xff] %v319
        %352 = vst [vmem:[%s163 + $0x50] sm:$0xff] %v320
        %353 = vst [vmem:[%s163 + $0x58] sm:$0xff] %v321
        %354 = vst [vmem:[%s163 + $0x60] sm:$0xff] %v322
        %355 = vst [vmem:[%s163 + $0x68] sm:$0xff] %v323
        %356 = vst [vmem:[%s163 + $0x70] sm:$0xff] %v324
        %357 = vst [vmem:[%s163 + $0x78] sm:$0xff] %v325
        %358 = vst [vmem:[%s163 + $0x80] sm:$0xff] %v326
        %359 = vst [vmem:[%s163 + $0x88] sm:$0xff] %v327
        %360 = vst [vmem:[%s163 + $0x90] sm:$0xff] %v328
        %361 = vst [vmem:[%s163 + $0x98] sm:$0xff] %v329
        %362 = vst [vmem:[%s163 + $0xa0] sm:$0xff] %v330
        %363 = vst [vmem:[%s163 + $0xa8] sm:$0xff] %v331
        %364 = vst [vmem:[%s163 + $0xb0] sm:$0xff] %v332
        %365 = vst [vmem:[%s163 + $0xb8] sm:$0xff] %v333
        %366 = vst [vmem:[%s163 + $0xc0] sm:$0xff] %v334
        %367 = vst [vmem:[%s163 + $0xc8] sm:$0xff] %v335
        %368 = vst [vmem:[%s163 + $0xd0] sm:$0xff] %v336
        %369 = vst [vmem:[%s163 + $0xd8] sm:$0xff] %v337
        %370 = vst [vmem:[%s163 + $0xe0] sm:$0xff] %v338
        %371 = vst [vmem:[%s163 + $0xe8] sm:$0xff] %v339
        %372 = vst [vmem:[%s163 + $0xf0] sm:$0xff] %v340
        %373 = vst [vmem:[%s163 + $0xf8] sm:$0xff] %v341
        %v374 = vld [vmem:[%s163] sm:$0xff]
        %v375 = vld [vmem:[%s163 + $0x8] sm:$0xff]
        %v376 = vld [vmem:[%s163 + $0x10] sm:$0xff]
        %v377 = vld [vmem:[%s163 + $0x18] sm:$0xff]
        %v378 = vld [vmem:[%s163 + $0x20] sm:$0xff]
        %v379 = vld [vmem:[%s163 + $0x28] sm:$0xff]
        %v380 = vld [vmem:[%s163 + $0x30] sm:$0xff]
        %v381 = vld [vmem:[%s163 + $0x38] sm:$0xff]
        %v382 = vld [vmem:[%s163 + $0x40] sm:$0xff]
        %v383 = vld [vmem:[%s163 + $0x48] sm:$0xff]
        %v384 = vld [vmem:[%s163 + $0x50] sm:$0xff]
        %v385 = vld [vmem:[%s163 + $0x58] sm:$0xff]
        %v386 = vld [vmem:[%s163 + $0x60] sm:$0xff]
        %v387 = vld [vmem:[%s163 + $0x68] sm:$0xff]
        %v388 = vld [vmem:[%s163 + $0x70] sm:$0xff]
        %v389 = vld [vmem:[%s163 + $0x78] sm:$0xff]
        %v390 = vld [vmem:[%s163 + $0x80] sm:$0xff]
        %v391 = vld [vmem:[%s163 + $0x88] sm:$0xff]
        %v392 = vld [vmem:[%s163 + $0x90] sm:$0xff]
        %v393 = vld [vmem:[%s163 + $0x98] sm:$0xff]
        %v394 = vld [vmem:[%s163 + $0xa0] sm:$0xff]
        %v395 = vld [vmem:[%s163 + $0xa8] sm:$0xff]
        %v396 = vld [vmem:[%s163 + $0xb0] sm:$0xff]
        %v397 = vld [vmem:[%s163 + $0xb8] sm:$0xff]
        %v398 = vld [vmem:[%s163 + $0xc0] sm:$0xff]
        %v399 = vld [vmem:[%s163 + $0xc8] sm:$0xff]
        %v400 = vld [vmem:[%s163 + $0xd0] sm:$0xff]
        %v401 = vld [vmem:[%s163 + $0xd8] sm:$0xff]
        %v402 = vld [vmem:[%s163 + $0xe0] sm:$0xff]
        %v403 = vld [vmem:[%s163 + $0xe8] sm:$0xff]
        %v404 = vld [vmem:[%s163 + $0xf0] sm:$0xff]
        %v405 = vld [vmem:[%s163 + $0xf8] sm:$0xff]
        %v406 = vld [vmem:[%s168 + $0x1] sm:$0xff]
        %v407 = vld [vmem:[%s168 + $0x9] sm:$0xff]
        %v408 = vld [vmem:[%s168 + $0x19] sm:$0xff]
        %v409 = vld [vmem:[%s168 + $0x21] sm:$0xff]
        %v410 = vld [vmem:[%s168 + $0x31] sm:$0xff]
        %v411 = vld [vmem:[%s168 + $0x39] sm:$0xff]
        %v412 = vld [vmem:[%s168 + $0x49] sm:$0xff]
        %v413 = vld [vmem:[%s168 + $0x51] sm:$0xff]
        %v414 = vld [vmem:[%s168 + $0x61] sm:$0xff]
        %v415 = vld [vmem:[%s168 + $0x69] sm:$0xff]
        %v416 = vld [vmem:[%s168 + $0x79] sm:$0xff]
        %v417 = vld [vmem:[%s168 + $0x81] sm:$0xff]
        %v418 = vld [vmem:[%s168 + $0x91] sm:$0xff]
        %v419 = vld [vmem:[%s168 + $0x99] sm:$0xff]
        %v420 = vld [vmem:[%s168 + $0xa9] sm:$0xff]
        %v421 = vld [vmem:[%s168 + $0xb1] sm:$0xff]
        %v422 = vld [vmem:[%s168 + $0xc1] sm:$0xff]
        %v423 = vld [vmem:[%s168 + $0xc9] sm:$0xff]
        %v424 = vld [vmem:[%s168 + $0xd9] sm:$0xff]
        %v425 = vld [vmem:[%s168 + $0xe1] sm:$0xff]
        %v426 = vld [vmem:[%s168 + $0xf1] sm:$0xff]
        %v427 = vld [vmem:[%s168 + $0xf9] sm:$0xff]
        %v428 = vld [vmem:[%s168 + $0x109] sm:$0xff]
        %v429 = vld [vmem:[%s168 + $0x111] sm:$0xff]
        %v430 = vld [vmem:[%s168 + $0x121] sm:$0xff]
        %v431 = vld [vmem:[%s168 + $0x129] sm:$0xff]
        %v432 = vld [vmem:[%s168 + $0x139] sm:$0xff]
        %v433 = vld [vmem:[%s168 + $0x141] sm:$0xff]
        %v434 = vld [vmem:[%s168 + $0x151] sm:$0xff]
        %v435 = vld [vmem:[%s168 + $0x159] sm:$0xff]
        %v436 = vld [vmem:[%s168 + $0x169] sm:$0xff]
        %v437 = vld [vmem:[%s168 + $0x171] sm:$0xff]
        %v438 = vld [vmem:[%s1 + $0x1] sm:$0x1]
        %v439 = vlaneseq
        %v440 = vshrl.u32 %v439, 7
        %v441 = vsub.s32 0, %v440
        %v442 = vrot.slane %v438, %v441
        %v443 = vmul.f32 %v406, %v442
        %v444 = vmul.f32 %v407, %v442
        %v445 = vmul.f32 %v408, %v442
        %v446 = vmul.f32 %v409, %v442
        %v447 = vmul.f32 %v410, %v442
        %v448 = vmul.f32 %v411, %v442
        %v449 = vmul.f32 %v412, %v442
        %v450 = vmul.f32 %v413, %v442
        %v451 = vmul.f32 %v414, %v442
        %v452 = vmul.f32 %v415, %v442
        %v453 = vmul.f32 %v416, %v442
        %v454 = vmul.f32 %v417, %v442
        %v455 = vmul.f32 %v418, %v442
        %v456 = vmul.f32 %v419, %v442
        %v457 = vmul.f32 %v420, %v442
        %v458 = vmul.f32 %v421, %v442
        %v459 = vmul.f32 %v422, %v442
        %v460 = vmul.f32 %v423, %v442
        %v461 = vmul.f32 %v424, %v442
        %v462 = vmul.f32 %v425, %v442
        %v463 = vmul.f32 %v426, %v442
        %v464 = vmul.f32 %v427, %v442
        %v465 = vmul.f32 %v428, %v442
        %v466 = vmul.f32 %v429, %v442
        %v467 = vmul.f32 %v430, %v442
        %v468 = vmul.f32 %v431, %v442
        %v469 = vmul.f32 %v432, %v442
        %v470 = vmul.f32 %v433, %v442
        %v471 = vmul.f32 %v434, %v442
        %v472 = vmul.f32 %v435, %v442
        %v473 = vmul.f32 %v436, %v442
        %v474 = vmul.f32 %v437, %v442
        %v475 = vadd.f32 %v374, %v443
        %v476 = vadd.f32 %v375, %v444
        %v477 = vadd.f32 %v376, %v445
        %v478 = vadd.f32 %v377, %v446
        %v479 = vadd.f32 %v378, %v447
        %v480 = vadd.f32 %v379, %v448
        %v481 = vadd.f32 %v380, %v449
        %v482 = vadd.f32 %v381, %v450
        %v483 = vadd.f32 %v382, %v451
        %v484 = vadd.f32 %v383, %v452
        %v485 = vadd.f32 %v384, %v453
        %v486 = vadd.f32 %v385, %v454
        %v487 = vadd.f32 %v386, %v455
        %v488 = vadd.f32 %v387, %v456
        %v489 = vadd.f32 %v388, %v457
        %v490 = vadd.f32 %v389, %v458
        %v491 = vadd.f32 %v390, %v459
        %v492 = vadd.f32 %v391, %v460
        %v493 = vadd.f32 %v392, %v461
        %v494 = vadd.f32 %v393, %v462
        %v495 = vadd.f32 %v394, %v463
        %v496 = vadd.f32 %v395, %v464
        %v497 = vadd.f32 %v396, %v465
        %v498 = vadd.f32 %v397, %v466
        %v499 = vadd.f32 %v398, %v467
        %v500 = vadd.f32 %v399, %v468
        %v501 = vadd.f32 %v400, %v469
        %v502 = vadd.f32 %v401, %v470
        %v503 = vadd.f32 %v402, %v471
        %v504 = vadd.f32 %v403, %v472
        %v505 = vadd.f32 %v404, %v473
        %v506 = vadd.f32 %v405, %v474
        %507 = vst [vmem:[%s163] sm:$0xff] %v475
        %508 = vst [vmem:[%s163 + $0x8] sm:$0xff] %v476
        %509 = vst [vmem:[%s163 + $0x10] sm:$0xff] %v477
        %510 = vst [vmem:[%s163 + $0x18] sm:$0xff] %v478
        %511 = vst [vmem:[%s163 + $0x20] sm:$0xff] %v479
        %512 = vst [vmem:[%s163 + $0x28] sm:$0xff] %v480
        %513 = vst [vmem:[%s163 + $0x30] sm:$0xff] %v481
        %514 = vst [vmem:[%s163 + $0x38] sm:$0xff] %v482
        %515 = vst [vmem:[%s163 + $0x40] sm:$0xff] %v483
        %516 = vst [vmem:[%s163 + $0x48] sm:$0xff] %v484
        %517 = vst [vmem:[%s163 + $0x50] sm:$0xff] %v485
        %518 = vst [vmem:[%s163 + $0x58] sm:$0xff] %v486
        %519 = vst [vmem:[%s163 + $0x60] sm:$0xff] %v487
        %520 = vst [vmem:[%s163 + $0x68] sm:$0xff] %v488
        %521 = vst [vmem:[%s163 + $0x70] sm:$0xff] %v489
        %522 = vst [vmem:[%s163 + $0x78] sm:$0xff] %v490
        %523 = vst [vmem:[%s163 + $0x80] sm:$0xff] %v491
        %524 = vst [vmem:[%s163 + $0x88] sm:$0xff] %v492
        %525 = vst [vmem:[%s163 + $0x90] sm:$0xff] %v493
        %526 = vst [vmem:[%s163 + $0x98] sm:$0xff] %v494
        %527 = vst [vmem:[%s163 + $0xa0] sm:$0xff] %v495
        %528 = vst [vmem:[%s163 + $0xa8] sm:$0xff] %v496
        %529 = vst [vmem:[%s163 + $0xb0] sm:$0xff] %v497
        %530 = vst [vmem:[%s163 + $0xb8] sm:$0xff] %v498
        %531 = vst [vmem:[%s163 + $0xc0] sm:$0xff] %v499
        %532 = vst [vmem:[%s163 + $0xc8] sm:$0xff] %v500
        %533 = vst [vmem:[%s163 + $0xd0] sm:$0xff] %v501
        %534 = vst [vmem:[%s163 + $0xd8] sm:$0xff] %v502
        %535 = vst [vmem:[%s163 + $0xe0] sm:$0xff] %v503
        %536 = vst [vmem:[%s163 + $0xe8] sm:$0xff] %v504
        %537 = vst [vmem:[%s163 + $0xf0] sm:$0xff] %v505
        %538 = vst [vmem:[%s163 + $0xf8] sm:$0xff] %v506
        %v539 = vld [vmem:[%s163] sm:$0xff]
        %v540 = vld [vmem:[%s163 + $0x8] sm:$0xff]
        %v541 = vld [vmem:[%s163 + $0x10] sm:$0xff]
        %v542 = vld [vmem:[%s163 + $0x18] sm:$0xff]
        %v543 = vld [vmem:[%s163 + $0x20] sm:$0xff]
        %v544 = vld [vmem:[%s163 + $0x28] sm:$0xff]
        %v545 = vld [vmem:[%s163 + $0x30] sm:$0xff]
        %v546 = vld [vmem:[%s163 + $0x38] sm:$0xff]
        %v547 = vld [vmem:[%s163 + $0x40] sm:$0xff]
        %v548 = vld [vmem:[%s163 + $0x48] sm:$0xff]
        %v549 = vld [vmem:[%s163 + $0x50] sm:$0xff]
        %v550 = vld [vmem:[%s163 + $0x58] sm:$0xff]
        %v551 = vld [vmem:[%s163 + $0x60] sm:$0xff]
        %v552 = vld [vmem:[%s163 + $0x68] sm:$0xff]
        %v553 = vld [vmem:[%s163 + $0x70] sm:$0xff]
        %v554 = vld [vmem:[%s163 + $0x78] sm:$0xff]
        %v555 = vld [vmem:[%s163 + $0x80] sm:$0xff]
        %v556 = vld [vmem:[%s163 + $0x88] sm:$0xff]
        %v557 = vld [vmem:[%s163 + $0x90] sm:$0xff]
        %v558 = vld [vmem:[%s163 + $0x98] sm:$0xff]
        %v559 = vld [vmem:[%s163 + $0xa0] sm:$0xff]
        %v560 = vld [vmem:[%s163 + $0xa8] sm:$0xff]
        %v561 = vld [vmem:[%s163 + $0xb0] sm:$0xff]
        %v562 = vld [vmem:[%s163 + $0xb8] sm:$0xff]
        %v563 = vld [vmem:[%s163 + $0xc0] sm:$0xff]
        %v564 = vld [vmem:[%s163 + $0xc8] sm:$0xff]
        %v565 = vld [vmem:[%s163 + $0xd0] sm:$0xff]
        %v566 = vld [vmem:[%s163 + $0xd8] sm:$0xff]
        %v567 = vld [vmem:[%s163 + $0xe0] sm:$0xff]
        %v568 = vld [vmem:[%s163 + $0xe8] sm:$0xff]
        %v569 = vld [vmem:[%s163 + $0xf0] sm:$0xff]
        %v570 = vld [vmem:[%s163 + $0xf8] sm:$0xff]
        %v571 = vld [vmem:[%s168 + $0x2] sm:$0xff]
        %v572 = vld [vmem:[%s168 + $0xa] sm:$0xff]
        %v573 = vld [vmem:[%s168 + $0x1a] sm:$0xff]
        %v574 = vld [vmem:[%s168 + $0x22] sm:$0xff]
        %v575 = vld [vmem:[%s168 + $0x32] sm:$0xff]
        %v576 = vld [vmem:[%s168 + $0x3a] sm:$0xff]
        %v577 = vld [vmem:[%s168 + $0x4a] sm:$0xff]
        %v578 = vld [vmem:[%s168 + $0x52] sm:$0xff]
        %v579 = vld [vmem:[%s168 + $0x62] sm:$0xff]
        %v580 = vld [vmem:[%s168 + $0x6a] sm:$0xff]
        %v581 = vld [vmem:[%s168 + $0x7a] sm:$0xff]
        %v582 = vld [vmem:[%s168 + $0x82] sm:$0xff]
        %v583 = vld [vmem:[%s168 + $0x92] sm:$0xff]
        %v584 = vld [vmem:[%s168 + $0x9a] sm:$0xff]
        %v585 = vld [vmem:[%s168 + $0xaa] sm:$0xff]
        %v586 = vld [vmem:[%s168 + $0xb2] sm:$0xff]
        %v587 = vld [vmem:[%s168 + $0xc2] sm:$0xff]
        %v588 = vld [vmem:[%s168 + $0xca] sm:$0xff]
        %v589 = vld [vmem:[%s168 + $0xda] sm:$0xff]
        %v590 = vld [vmem:[%s168 + $0xe2] sm:$0xff]
        %v591 = vld [vmem:[%s168 + $0xf2] sm:$0xff]
        %v592 = vld [vmem:[%s168 + $0xfa] sm:$0xff]
        %v593 = vld [vmem:[%s168 + $0x10a] sm:$0xff]
        %v594 = vld [vmem:[%s168 + $0x112] sm:$0xff]
        %v595 = vld [vmem:[%s168 + $0x122] sm:$0xff]
        %v596 = vld [vmem:[%s168 + $0x12a] sm:$0xff]
        %v597 = vld [vmem:[%s168 + $0x13a] sm:$0xff]
        %v598 = vld [vmem:[%s168 + $0x142] sm:$0xff]
        %v599 = vld [vmem:[%s168 + $0x152] sm:$0xff]
        %v600 = vld [vmem:[%s168 + $0x15a] sm:$0xff]
        %v601 = vld [vmem:[%s168 + $0x16a] sm:$0xff]
        %v602 = vld [vmem:[%s168 + $0x172] sm:$0xff]
        %v603 = vld [vmem:[%s1 + $0x2] sm:$0x1]
        %v604 = vlaneseq
        %v605 = vshrl.u32 %v604, 7
        %v606 = vsub.s32 0, %v605
        %v607 = vrot.slane %v603, %v606
        %v608 = vmul.f32 %v571, %v607
        %v609 = vmul.f32 %v572, %v607
        %v610 = vmul.f32 %v573, %v607
        %v611 = vmul.f32 %v574, %v607
        %v612 = vmul.f32 %v575, %v607
        %v613 = vmul.f32 %v576, %v607
        %v614 = vmul.f32 %v577, %v607
        %v615 = vmul.f32 %v578, %v607
        %v616 = vmul.f32 %v579, %v607
        %v617 = vmul.f32 %v580, %v607
        %v618 = vmul.f32 %v581, %v607
        %v619 = vmul.f32 %v582, %v607
        %v620 = vmul.f32 %v583, %v607
        %v621 = vmul.f32 %v584, %v607
        %v622 = vmul.f32 %v585, %v607
        %v623 = vmul.f32 %v586, %v607
        %v624 = vmul.f32 %v587, %v607
        %v625 = vmul.f32 %v588, %v607
        %v626 = vmul.f32 %v589, %v607
        %v627 = vmul.f32 %v590, %v607
        %v628 = vmul.f32 %v591, %v607
        %v629 = vmul.f32 %v592, %v607
        %v630 = vmul.f32 %v593, %v607
        %v631 = vmul.f32 %v594, %v607
        %v632 = vmul.f32 %v595, %v607
        %v633 = vmul.f32 %v596, %v607
        %v634 = vmul.f32 %v597, %v607
        %v635 = vmul.f32 %v598, %v607
        %v636 = vmul.f32 %v599, %v607
        %v637 = vmul.f32 %v600, %v607
        %v638 = vmul.f32 %v601, %v607
        %v639 = vmul.f32 %v602, %v607
        %v640 = vadd.f32 %v539, %v608
        %v641 = vadd.f32 %v540, %v609
        %v642 = vadd.f32 %v541, %v610
        %v643 = vadd.f32 %v542, %v611
        %v644 = vadd.f32 %v543, %v612
        %v645 = vadd.f32 %v544, %v613
        %v646 = vadd.f32 %v545, %v614
        %v647 = vadd.f32 %v546, %v615
        %v648 = vadd.f32 %v547, %v616
        %v649 = vadd.f32 %v548, %v617
        %v650 = vadd.f32 %v549, %v618
        %v651 = vadd.f32 %v550, %v619
        %v652 = vadd.f32 %v551, %v620
        %v653 = vadd.f32 %v552, %v621
        %v654 = vadd.f32 %v553, %v622
        %v655 = vadd.f32 %v554, %v623
        %v656 = vadd.f32 %v555, %v624
        %v657 = vadd.f32 %v556, %v625
        %v658 = vadd.f32 %v557, %v626
        %v659 = vadd.f32 %v558, %v627
        %v660 = vadd.f32 %v559, %v628
        %v661 = vadd.f32 %v560, %v629
        %v662 = vadd.f32 %v561, %v630
        %v663 = vadd.f32 %v562, %v631
        %v664 = vadd.f32 %v563, %v632
        %v665 = vadd.f32 %v564, %v633
        %v666 = vadd.f32 %v565, %v634
        %v667 = vadd.f32 %v566, %v635
        %v668 = vadd.f32 %v567, %v636
        %v669 = vadd.f32 %v568, %v637
        %v670 = vadd.f32 %v569, %v638
        %v671 = vadd.f32 %v570, %v639
        %672 = vst [vmem:[%s163] sm:$0xff] %v640
        %673 = vst [vmem:[%s163 + $0x8] sm:$0xff] %v641
        %674 = vst [vmem:[%s163 + $0x10] sm:$0xff] %v642
        %675 = vst [vmem:[%s163 + $0x18] sm:$0xff] %v643
        %676 = vst [vmem:[%s163 + $0x20] sm:$0xff] %v644
        %677 = vst [vmem:[%s163 + $0x28] sm:$0xff] %v645
        %678 = vst [vmem:[%s163 + $0x30] sm:$0xff] %v646
        %679 = vst [vmem:[%s163 + $0x38] sm:$0xff] %v647
        %680 = vst [vmem:[%s163 + $0x40] sm:$0xff] %v648
        %681 = vst [vmem:[%s163 + $0x48] sm:$0xff] %v649
        %682 = vst [vmem:[%s163 + $0x50] sm:$0xff] %v650
        %683 = vst [vmem:[%s163 + $0x58] sm:$0xff] %v651
        %684 = vst [vmem:[%s163 + $0x60] sm:$0xff] %v652
        %685 = vst [vmem:[%s163 + $0x68] sm:$0xff] %v653
        %686 = vst [vmem:[%s163 + $0x70] sm:$0xff] %v654
        %687 = vst [vmem:[%s163 + $0x78] sm:$0xff] %v655
        %688 = vst [vmem:[%s163 + $0x80] sm:$0xff] %v656
        %689 = vst [vmem:[%s163 + $0x88] sm:$0xff] %v657
        %690 = vst [vmem:[%s163 + $0x90] sm:$0xff] %v658
        %691 = vst [vmem:[%s163 + $0x98] sm:$0xff] %v659
        %692 = vst [vmem:[%s163 + $0xa0] sm:$0xff] %v660
        %693 = vst [vmem:[%s163 + $0xa8] sm:$0xff] %v661
        %694 = vst [vmem:[%s163 + $0xb0] sm:$0xff] %v662
        %695 = vst [vmem:[%s163 + $0xb8] sm:$0xff] %v663
        %696 = vst [vmem:[%s163 + $0xc0] sm:$0xff] %v664
        %697 = vst [vmem:[%s163 + $0xc8] sm:$0xff] %v665
        %698 = vst [vmem:[%s163 + $0xd0] sm:$0xff] %v666
        %699 = vst [vmem:[%s163 + $0xd8] sm:$0xff] %v667
        %700 = vst [vmem:[%s163 + $0xe0] sm:$0xff] %v668
        %701 = vst [vmem:[%s163 + $0xe8] sm:$0xff] %v669
        %702 = vst [vmem:[%s163 + $0xf0] sm:$0xff] %v670
        %703 = vst [vmem:[%s163 + $0xf8] sm:$0xff] %v671
        %v704 = vld [vmem:[%s163] sm:$0xff]
        %v705 = vld [vmem:[%s163 + $0x8] sm:$0xff]
        %v706 = vld [vmem:[%s163 + $0x10] sm:$0xff]
        %v707 = vld [vmem:[%s163 + $0x18] sm:$0xff]
        %v708 = vld [vmem:[%s163 + $0x20] sm:$0xff]
        %v709 = vld [vmem:[%s163 + $0x28] sm:$0xff]
        %v710 = vld [vmem:[%s163 + $0x30] sm:$0xff]
        %v711 = vld [vmem:[%s163 + $0x38] sm:$0xff]
        %v712 = vld [vmem:[%s163 + $0x40] sm:$0xff]
        %v713 = vld [vmem:[%s163 + $0x48] sm:$0xff]
        %v714 = vld [vmem:[%s163 + $0x50] sm:$0xff]
        %v715 = vld [vmem:[%s163 + $0x58] sm:$0xff]
        %v716 = vld [vmem:[%s163 + $0x60] sm:$0xff]
        %v717 = vld [vmem:[%s163 + $0x68] sm:$0xff]
        %v718 = vld [vmem:[%s163 + $0x70] sm:$0xff]
        %v719 = vld [vmem:[%s163 + $0x78] sm:$0xff]
        %v720 = vld [vmem:[%s163 + $0x80] sm:$0xff]
        %v721 = vld [vmem:[%s163 + $0x88] sm:$0xff]
        %v722 = vld [vmem:[%s163 + $0x90] sm:$0xff]
        %v723 = vld [vmem:[%s163 + $0x98] sm:$0xff]
        %v724 = vld [vmem:[%s163 + $0xa0] sm:$0xff]
        %v725 = vld [vmem:[%s163 + $0xa8] sm:$0xff]
        %v726 = vld [vmem:[%s163 + $0xb0] sm:$0xff]
        %v727 = vld [vmem:[%s163 + $0xb8] sm:$0xff]
        %v728 = vld [vmem:[%s163 + $0xc0] sm:$0xff]
        %v729 = vld [vmem:[%s163 + $0xc8] sm:$0xff]
        %v730 = vld [vmem:[%s163 + $0xd0] sm:$0xff]
        %v731 = vld [vmem:[%s163 + $0xd8] sm:$0xff]
        %v732 = vld [vmem:[%s163 + $0xe0] sm:$0xff]
        %v733 = vld [vmem:[%s163 + $0xe8] sm:$0xff]
        %v734 = vld [vmem:[%s163 + $0xf0] sm:$0xff]
        %v735 = vld [vmem:[%s163 + $0xf8] sm:$0xff]
        %s736 = scalar_lea.vmem %s168, 24
        %v737 = vld [vmem:[%s736] sm:$0xff]
        %v738 = vld [vmem:[%s736 + $0x8] sm:$0xff]
        %v739 = vld [vmem:[%s736 + $0x18] sm:$0xff]
        %v740 = vld [vmem:[%s736 + $0x20] sm:$0xff]
        %v741 = vld [vmem:[%s736 + $0x30] sm:$0xff]
        %v742 = vld [vmem:[%s736 + $0x38] sm:$0xff]
        %v743 = vld [vmem:[%s736 + $0x48] sm:$0xff]
        %v744 = vld [vmem:[%s736 + $0x50] sm:$0xff]
        %v745 = vld [vmem:[%s736 + $0x60] sm:$0xff]
        %v746 = vld [vmem:[%s736 + $0x68] sm:$0xff]
        %v747 = vld [vmem:[%s736 + $0x78] sm:$0xff]
        %v748 = vld [vmem:[%s736 + $0x80] sm:$0xff]
        %v749 = vld [vmem:[%s736 + $0x90] sm:$0xff]
        %v750 = vld [vmem:[%s736 + $0x98] sm:$0xff]
        %v751 = vld [vmem:[%s736 + $0xa8] sm:$0xff]
        %v752 = vld [vmem:[%s736 + $0xb0] sm:$0xff]
        %v753 = vld [vmem:[%s736 + $0xc0] sm:$0xff]
        %v754 = vld [vmem:[%s736 + $0xc8] sm:$0xff]
        %v755 = vld [vmem:[%s736 + $0xd8] sm:$0xff]
        %v756 = vld [vmem:[%s736 + $0xe0] sm:$0xff]
        %v757 = vld [vmem:[%s736 + $0xf0] sm:$0xff]
        %v758 = vld [vmem:[%s736 + $0xf8] sm:$0xff]
        %v759 = vld [vmem:[%s736 + $0x108] sm:$0xff]
        %v760 = vld [vmem:[%s736 + $0x110] sm:$0xff]
        %v761 = vld [vmem:[%s736 + $0x120] sm:$0xff]
        %v762 = vld [vmem:[%s736 + $0x128] sm:$0xff]
        %v763 = vld [vmem:[%s736 + $0x138] sm:$0xff]
        %v764 = vld [vmem:[%s736 + $0x140] sm:$0xff]
        %v765 = vld [vmem:[%s736 + $0x150] sm:$0xff]
        %v766 = vld [vmem:[%s736 + $0x158] sm:$0xff]
        %v767 = vld [vmem:[%s736 + $0x168] sm:$0xff]
        %v768 = vld [vmem:[%s736 + $0x170] sm:$0xff]
        %v769 = vld [vmem:[%s1 + $0x3] sm:$0x1]
        %v770 = vlaneseq
        %v771 = vshrl.u32 %v770, 7
        %v772 = vsub.s32 0, %v771
        %v773 = vrot.slane %v769, %v772
        %v774 = vmul.f32 %v737, %v773
        %v775 = vmul.f32 %v738, %v773
        %v776 = vmul.f32 %v739, %v773
        %v777 = vmul.f32 %v740, %v773
        %v778 = vmul.f32 %v741, %v773
        %v779 = vmul.f32 %v742, %v773
        %v780 = vmul.f32 %v743, %v773
        %v781 = vmul.f32 %v744, %v773
        %v782 = vmul.f32 %v745, %v773
        %v783 = vmul.f32 %v746, %v773
        %v784 = vmul.f32 %v747, %v773
        %v785 = vmul.f32 %v748, %v773
        %v786 = vmul.f32 %v749, %v773
        %v787 = vmul.f32 %v750, %v773
        %v788 = vmul.f32 %v751, %v773
        %v789 = vmul.f32 %v752, %v773
        %v790 = vmul.f32 %v753, %v773
        %v791 = vmul.f32 %v754, %v773
        %v792 = vmul.f32 %v755, %v773
        %v793 = vmul.f32 %v756, %v773
        %v794 = vmul.f32 %v757, %v773
        %v795 = vmul.f32 %v758, %v773
        %v796 = vmul.f32 %v759, %v773
        %v797 = vmul.f32 %v760, %v773
        %v798 = vmul.f32 %v761, %v773
        %v799 = vmul.f32 %v762, %v773
        %v800 = vmul.f32 %v763, %v773
        %v801 = vmul.f32 %v764, %v773
        %v802 = vmul.f32 %v765, %v773
        %v803 = vmul.f32 %v766, %v773
        %v804 = vmul.f32 %v767, %v773
        %v805 = vmul.f32 %v768, %v773
        %v806 = vadd.f32 %v704, %v774
        %v807 = vadd.f32 %v705, %v775
        %v808 = vadd.f32 %v706, %v776
        %v809 = vadd.f32 %v707, %v777
        %v810 = vadd.f32 %v708, %v778
        %v811 = vadd.f32 %v709, %v779
        %v812 = vadd.f32 %v710, %v780
        %v813 = vadd.f32 %v711, %v781
        %v814 = vadd.f32 %v712, %v782
        %v815 = vadd.f32 %v713, %v783
        %v816 = vadd.f32 %v714, %v784
        %v817 = vadd.f32 %v715, %v785
        %v818 = vadd.f32 %v716, %v786
        %v819 = vadd.f32 %v717, %v787
        %v820 = vadd.f32 %v718, %v788
        %v821 = vadd.f32 %v719, %v789
        %v822 = vadd.f32 %v720, %v790
        %v823 = vadd.f32 %v721, %v791
        %v824 = vadd.f32 %v722, %v792
        %v825 = vadd.f32 %v723, %v793
        %v826 = vadd.f32 %v724, %v794
        %v827 = vadd.f32 %v725, %v795
        %v828 = vadd.f32 %v726, %v796
        %v829 = vadd.f32 %v727, %v797
        %v830 = vadd.f32 %v728, %v798
        %v831 = vadd.f32 %v729, %v799
        %v832 = vadd.f32 %v730, %v800
        %v833 = vadd.f32 %v731, %v801
        %v834 = vadd.f32 %v732, %v802
        %v835 = vadd.f32 %v733, %v803
        %v836 = vadd.f32 %v734, %v804
        %v837 = vadd.f32 %v735, %v805
        %838 = vst [vmem:[%s163] sm:$0xff] %v806
        %839 = vst [vmem:[%s163 + $0x8] sm:$0xff] %v807
        %840 = vst [vmem:[%s163 + $0x10] sm:$0xff] %v808
        %841 = vst [vmem:[%s163 + $0x18] sm:$0xff] %v809
        %842 = vst [vmem:[%s163 + $0x20] sm:$0xff] %v810
        %843 = vst [vmem:[%s163 + $0x28] sm:$0xff] %v811
        %844 = vst [vmem:[%s163 + $0x30] sm:$0xff] %v812
        %845 = vst [vmem:[%s163 + $0x38] sm:$0xff] %v813
        %846 = vst [vmem:[%s163 + $0x40] sm:$0xff] %v814
        %847 = vst [vmem:[%s163 + $0x48] sm:$0xff] %v815
        %848 = vst [vmem:[%s163 + $0x50] sm:$0xff] %v816
        %849 = vst [vmem:[%s163 + $0x58] sm:$0xff] %v817
        %850 = vst [vmem:[%s163 + $0x60] sm:$0xff] %v818
        %851 = vst [vmem:[%s163 + $0x68] sm:$0xff] %v819
        %852 = vst [vmem:[%s163 + $0x70] sm:$0xff] %v820
        %853 = vst [vmem:[%s163 + $0x78] sm:$0xff] %v821
        %854 = vst [vmem:[%s163 + $0x80] sm:$0xff] %v822
        %855 = vst [vmem:[%s163 + $0x88] sm:$0xff] %v823
        %856 = vst [vmem:[%s163 + $0x90] sm:$0xff] %v824
        %857 = vst [vmem:[%s163 + $0x98] sm:$0xff] %v825
        %858 = vst [vmem:[%s163 + $0xa0] sm:$0xff] %v826
        %859 = vst [vmem:[%s163 + $0xa8] sm:$0xff] %v827
        %860 = vst [vmem:[%s163 + $0xb0] sm:$0xff] %v828
        %861 = vst [vmem:[%s163 + $0xb8] sm:$0xff] %v829
        %862 = vst [vmem:[%s163 + $0xc0] sm:$0xff] %v830
        %863 = vst [vmem:[%s163 + $0xc8] sm:$0xff] %v831
        %864 = vst [vmem:[%s163 + $0xd0] sm:$0xff] %v832
        %865 = vst [vmem:[%s163 + $0xd8] sm:$0xff] %v833
        %866 = vst [vmem:[%s163 + $0xe0] sm:$0xff] %v834
        %867 = vst [vmem:[%s163 + $0xe8] sm:$0xff] %v835
        %868 = vst [vmem:[%s163 + $0xf0] sm:$0xff] %v836
        %869 = vst [vmem:[%s163 + $0xf8] sm:$0xff] %v837
        %v870 = vld [vmem:[%s163] sm:$0xff]
        %v871 = vld [vmem:[%s163 + $0x8] sm:$0xff]
        %v872 = vld [vmem:[%s163 + $0x10] sm:$0xff]
        %v873 = vld [vmem:[%s163 + $0x18] sm:$0xff]
        %v874 = vld [vmem:[%s163 + $0x20] sm:$0xff]
        %v875 = vld [vmem:[%s163 + $0x28] sm:$0xff]
        %v876 = vld [vmem:[%s163 + $0x30] sm:$0xff]
        %v877 = vld [vmem:[%s163 + $0x38] sm:$0xff]
        %v878 = vld [vmem:[%s163 + $0x40] sm:$0xff]
        %v879 = vld [vmem:[%s163 + $0x48] sm:$0xff]
        %v880 = vld [vmem:[%s163 + $0x50] sm:$0xff]
        %v881 = vld [vmem:[%s163 + $0x58] sm:$0xff]
        %v882 = vld [vmem:[%s163 + $0x60] sm:$0xff]
        %v883 = vld [vmem:[%s163 + $0x68] sm:$0xff]
        %v884 = vld [vmem:[%s163 + $0x70] sm:$0xff]
        %v885 = vld [vmem:[%s163 + $0x78] sm:$0xff]
        %v886 = vld [vmem:[%s163 + $0x80] sm:$0xff]
        %v887 = vld [vmem:[%s163 + $0x88] sm:$0xff]
        %v888 = vld [vmem:[%s163 + $0x90] sm:$0xff]
        %v889 = vld [vmem:[%s163 + $0x98] sm:$0xff]
        %v890 = vld [vmem:[%s163 + $0xa0] sm:$0xff]
        %v891 = vld [vmem:[%s163 + $0xa8] sm:$0xff]
        %v892 = vld [vmem:[%s163 + $0xb0] sm:$0xff]
        %v893 = vld [vmem:[%s163 + $0xb8] sm:$0xff]
        %v894 = vld [vmem:[%s163 + $0xc0] sm:$0xff]
        %v895 = vld [vmem:[%s163 + $0xc8] sm:$0xff]
        %v896 = vld [vmem:[%s163 + $0xd0] sm:$0xff]
        %v897 = vld [vmem:[%s163 + $0xd8] sm:$0xff]
        %v898 = vld [vmem:[%s163 + $0xe0] sm:$0xff]
        %v899 = vld [vmem:[%s163 + $0xe8] sm:$0xff]
        %v900 = vld [vmem:[%s163 + $0xf0] sm:$0xff]
        %v901 = vld [vmem:[%s163 + $0xf8] sm:$0xff]
        %v902 = vld [vmem:[%s736 + $0x1] sm:$0xff]
        %v903 = vld [vmem:[%s736 + $0x9] sm:$0xff]
        %v904 = vld [vmem:[%s736 + $0x19] sm:$0xff]
        %v905 = vld [vmem:[%s736 + $0x21] sm:$0xff]
        %v906 = vld [vmem:[%s736 + $0x31] sm:$0xff]
        %v907 = vld [vmem:[%s736 + $0x39] sm:$0xff]
        %v908 = vld [vmem:[%s736 + $0x49] sm:$0xff]
        %v909 = vld [vmem:[%s736 + $0x51] sm:$0xff]
        %v910 = vld [vmem:[%s736 + $0x61] sm:$0xff]
        %v911 = vld [vmem:[%s736 + $0x69] sm:$0xff]
        %v912 = vld [vmem:[%s736 + $0x79] sm:$0xff]
        %v913 = vld [vmem:[%s736 + $0x81] sm:$0xff]
        %v914 = vld [vmem:[%s736 + $0x91] sm:$0xff]
        %v915 = vld [vmem:[%s736 + $0x99] sm:$0xff]
        %v916 = vld [vmem:[%s736 + $0xa9] sm:$0xff]
        %v917 = vld [vmem:[%s736 + $0xb1] sm:$0xff]
        %v918 = vld [vmem:[%s736 + $0xc1] sm:$0xff]
        %v919 = vld [vmem:[%s736 + $0xc9] sm:$0xff]
        %v920 = vld [vmem:[%s736 + $0xd9] sm:$0xff]
        %v921 = vld [vmem:[%s736 + $0xe1] sm:$0xff]
        %v922 = vld [vmem:[%s736 + $0xf1] sm:$0xff]
        %v923 = vld [vmem:[%s736 + $0xf9] sm:$0xff]
        %v924 = vld [vmem:[%s736 + $0x109] sm:$0xff]
        %v925 = vld [vmem:[%s736 + $0x111] sm:$0xff]
        %v926 = vld [vmem:[%s736 + $0x121] sm:$0xff]
        %v927 = vld [vmem:[%s736 + $0x129] sm:$0xff]
        %v928 = vld [vmem:[%s736 + $0x139] sm:$0xff]
        %v929 = vld [vmem:[%s736 + $0x141] sm:$0xff]
        %v930 = vld [vmem:[%s736 + $0x151] sm:$0xff]
        %v931 = vld [vmem:[%s736 + $0x159] sm:$0xff]
        %v932 = vld [vmem:[%s736 + $0x169] sm:$0xff]
        %v933 = vld [vmem:[%s736 + $0x171] sm:$0xff]
        %v934 = vld [vmem:[%s1 + $0x4] sm:$0x1]
        %v935 = vlaneseq
        %v936 = vshrl.u32 %v935, 7
        %v937 = vsub.s32 0, %v936
        %v938 = vrot.slane %v934, %v937
        %v939 = vmul.f32 %v902, %v938
        %v940 = vmul.f32 %v903, %v938
        %v941 = vmul.f32 %v904, %v938
        %v942 = vmul.f32 %v905, %v938
        %v943 = vmul.f32 %v906, %v938
        %v944 = vmul.f32 %v907, %v938
        %v945 = vmul.f32 %v908, %v938
        %v946 = vmul.f32 %v909, %v938
        %v947 = vmul.f32 %v910, %v938
        %v948 = vmul.f32 %v911, %v938
        %v949 = vmul.f32 %v912, %v938
        %v950 = vmul.f32 %v913, %v938
        %v951 = vmul.f32 %v914, %v938
        %v952 = vmul.f32 %v915, %v938
        %v953 = vmul.f32 %v916, %v938
        %v954 = vmul.f32 %v917, %v938
        %v955 = vmul.f32 %v918, %v938
        %v956 = vmul.f32 %v919, %v938
        %v957 = vmul.f32 %v920, %v938
        %v958 = vmul.f32 %v921, %v938
        %v959 = vmul.f32 %v922, %v938
        %v960 = vmul.f32 %v923, %v938
        %v961 = vmul.f32 %v924, %v938
        %v962 = vmul.f32 %v925, %v938
        %v963 = vmul.f32 %v926, %v938
        %v964 = vmul.f32 %v927, %v938
        %v965 = vmul.f32 %v928, %v938
        %v966 = vmul.f32 %v929, %v938
        %v967 = vmul.f32 %v930, %v938
        %v968 = vmul.f32 %v931, %v938
        %v969 = vmul.f32 %v932, %v938
        %v970 = vmul.f32 %v933, %v938
        %v971 = vadd.f32 %v870, %v939
        %v972 = vadd.f32 %v871, %v940
        %v973 = vadd.f32 %v872, %v941
        %v974 = vadd.f32 %v873, %v942
        %v975 = vadd.f32 %v874, %v943
        %v976 = vadd.f32 %v875, %v944
        %v977 = vadd.f32 %v876, %v945
        %v978 = vadd.f32 %v877, %v946
        %v979 = vadd.f32 %v878, %v947
        %v980 = vadd.f32 %v879, %v948
        %v981 = vadd.f32 %v880, %v949
        %v982 = vadd.f32 %v881, %v950
        %v983 = vadd.f32 %v882, %v951
        %v984 = vadd.f32 %v883, %v952
        %v985 = vadd.f32 %v884, %v953
        %v986 = vadd.f32 %v885, %v954
        %v987 = vadd.f32 %v886, %v955
        %v988 = vadd.f32 %v887, %v956
        %v989 = vadd.f32 %v888, %v957
        %v990 = vadd.f32 %v889, %v958
        %v991 = vadd.f32 %v890, %v959
        %v992 = vadd.f32 %v891, %v960
        %v993 = vadd.f32 %v892, %v961
        %v994 = vadd.f32 %v893, %v962
        %v995 = vadd.f32 %v894, %v963
        %v996 = vadd.f32 %v895, %v964
        %v997 = vadd.f32 %v896, %v965
        %v998 = vadd.f32 %v897, %v966
        %v999 = vadd.f32 %v898, %v967
        %v1000 = vadd.f32 %v899, %v968
        %v1001 = vadd.f32 %v900, %v969
        %v1002 = vadd.f32 %v901, %v970
        %1003 = vst [vmem:[%s163] sm:$0xff] %v971
        %1004 = vst [vmem:[%s163 + $0x8] sm:$0xff] %v972
        %1005 = vst [vmem:[%s163 + $0x10] sm:$0xff] %v973
        %1006 = vst [vmem:[%s163 + $0x18] sm:$0xff] %v974
        %1007 = vst [vmem:[%s163 + $0x20] sm:$0xff] %v975
        %1008 = vst [vmem:[%s163 + $0x28] sm:$0xff] %v976
        %1009 = vst [vmem:[%s163 + $0x30] sm:$0xff] %v977
        %1010 = vst [vmem:[%s163 + $0x38] sm:$0xff] %v978
        %1011 = vst [vmem:[%s163 + $0x40] sm:$0xff] %v979
        %1012 = vst [vmem:[%s163 + $0x48] sm:$0xff] %v980
        %1013 = vst [vmem:[%s163 + $0x50] sm:$0xff] %v981
        %1014 = vst [vmem:[%s163 + $0x58] sm:$0xff] %v982
        %1015 = vst [vmem:[%s163 + $0x60] sm:$0xff] %v983
        %1016 = vst [vmem:[%s163 + $0x68] sm:$0xff] %v984
        %1017 = vst [vmem:[%s163 + $0x70] sm:$0xff] %v985
        %1018 = vst [vmem:[%s163 + $0x78] sm:$0xff] %v986
        %1019 = vst [vmem:[%s163 + $0x80] sm:$0xff] %v987
        %1020 = vst [vmem:[%s163 + $0x88] sm:$0xff] %v988
        %1021 = vst [vmem:[%s163 + $0x90] sm:$0xff] %v989
        %1022 = vst [vmem:[%s163 + $0x98] sm:$0xff] %v990
        %1023 = vst [vmem:[%s163 + $0xa0] sm:$0xff] %v991
        %1024 = vst [vmem:[%s163 + $0xa8] sm:$0xff] %v992
        %1025 = vst [vmem:[%s163 + $0xb0] sm:$0xff] %v993
        %1026 = vst [vmem:[%s163 + $0xb8] sm:$0xff] %v994
        %1027 = vst [vmem:[%s163 + $0xc0] sm:$0xff] %v995
        %1028 = vst [vmem:[%s163 + $0xc8] sm:$0xff] %v996
        %1029 = vst [vmem:[%s163 + $0xd0] sm:$0xff] %v997
        %1030 = vst [vmem:[%s163 + $0xd8] sm:$0xff] %v998
        %1031 = vst [vmem:[%s163 + $0xe0] sm:$0xff] %v999
        %1032 = vst [vmem:[%s163 + $0xe8] sm:$0xff] %v1000
        %1033 = vst [vmem:[%s163 + $0xf0] sm:$0xff] %v1001
        %1034 = vst [vmem:[%s163 + $0xf8] sm:$0xff] %v1002
        %v1035 = vld [vmem:[%s163] sm:$0xff]
        %v1036 = vld [vmem:[%s163 + $0x8] sm:$0xff]
        %v1037 = vld [vmem:[%s163 + $0x10] sm:$0xff]
        %v1038 = vld [vmem:[%s163 + $0x18] sm:$0xff]
        %v1039 = vld [vmem:[%s163 + $0x20] sm:$0xff]
        %v1040 = vld [vmem:[%s163 + $0x28] sm:$0xff]
        %v1041 = vld [vmem:[%s163 + $0x30] sm:$0xff]
        %v1042 = vld [vmem:[%s163 + $0x38] sm:$0xff]
        %v1043 = vld [vmem:[%s163 + $0x40] sm:$0xff]
        %v1044 = vld [vmem:[%s163 + $0x48] sm:$0xff]
        %v1045 = vld [vmem:[%s163 + $0x50] sm:$0xff]
        %v1046 = vld [vmem:[%s163 + $0x58] sm:$0xff]
        %v1047 = vld [vmem:[%s163 + $0x60] sm:$0xff]
        %v1048 = vld [vmem:[%s163 + $0x68] sm:$0xff]
        %v1049 = vld [vmem:[%s163 + $0x70] sm:$0xff]
        %v1050 = vld [vmem:[%s163 + $0x78] sm:$0xff]
        %v1051 = vld [vmem:[%s163 + $0x80] sm:$0xff]
        %v1052 = vld [vmem:[%s163 + $0x88] sm:$0xff]
        %v1053 = vld [vmem:[%s163 + $0x90] sm:$0xff]
        %v1054 = vld [vmem:[%s163 + $0x98] sm:$0xff]
        %v1055 = vld [vmem:[%s163 + $0xa0] sm:$0xff]
        %v1056 = vld [vmem:[%s163 + $0xa8] sm:$0xff]
        %v1057 = vld [vmem:[%s163 + $0xb0] sm:$0xff]
        %v1058 = vld [vmem:[%s163 + $0xb8] sm:$0xff]
        %v1059 = vld [vmem:[%s163 + $0xc0] sm:$0xff]
        %v1060 = vld [vmem:[%s163 + $0xc8] sm:$0xff]
        %v1061 = vld [vmem:[%s163 + $0xd0] sm:$0xff]
        %v1062 = vld [vmem:[%s163 + $0xd8] sm:$0xff]
        %v1063 = vld [vmem:[%s163 + $0xe0] sm:$0xff]
        %v1064 = vld [vmem:[%s163 + $0xe8] sm:$0xff]
        %v1065 = vld [vmem:[%s163 + $0xf0] sm:$0xff]
        %v1066 = vld [vmem:[%s163 + $0xf8] sm:$0xff]
        %v1067 = vld [vmem:[%s736 + $0x2] sm:$0xff]
        %v1068 = vld [vmem:[%s736 + $0xa] sm:$0xff]
        %v1069 = vld [vmem:[%s736 + $0x1a] sm:$0xff]
        %v1070 = vld [vmem:[%s736 + $0x22] sm:$0xff]
        %v1071 = vld [vmem:[%s736 + $0x32] sm:$0xff]
        %v1072 = vld [vmem:[%s736 + $0x3a] sm:$0xff]
        %v1073 = vld [vmem:[%s736 + $0x4a] sm:$0xff]
        %v1074 = vld [vmem:[%s736 + $0x52] sm:$0xff]
        %v1075 = vld [vmem:[%s736 + $0x62] sm:$0xff]
        %v1076 = vld [vmem:[%s736 + $0x6a] sm:$0xff]
        %v1077 = vld [vmem:[%s736 + $0x7a] sm:$0xff]
        %v1078 = vld [vmem:[%s736 + $0x82] sm:$0xff]
        %v1079 = vld [vmem:[%s736 + $0x92] sm:$0xff]
        %v1080 = vld [vmem:[%s736 + $0x9a] sm:$0xff]
        %v1081 = vld [vmem:[%s736 + $0xaa] sm:$0xff]
        %v1082 = vld [vmem:[%s736 + $0xb2] sm:$0xff]
        %v1083 = vld [vmem:[%s736 + $0xc2] sm:$0xff]
        %v1084 = vld [vmem:[%s736 + $0xca] sm:$0xff]
        %v1085 = vld [vmem:[%s736 + $0xda] sm:$0xff]
        %v1086 = vld [vmem:[%s736 + $0xe2] sm:$0xff]
        %v1087 = vld [vmem:[%s736 + $0xf2] sm:$0xff]
        %v1088 = vld [vmem:[%s736 + $0xfa] sm:$0xff]
        %v1089 = vld [vmem:[%s736 + $0x10a] sm:$0xff]
        %v1090 = vld [vmem:[%s736 + $0x112] sm:$0xff]
        %v1091 = vld [vmem:[%s736 + $0x122] sm:$0xff]
        %v1092 = vld [vmem:[%s736 + $0x12a] sm:$0xff]
        %v1093 = vld [vmem:[%s736 + $0x13a] sm:$0xff]
        %v1094 = vld [vmem:[%s736 + $0x142] sm:$0xff]
        %v1095 = vld [vmem:[%s736 + $0x152] sm:$0xff]
        %v1096 = vld [vmem:[%s736 + $0x15a] sm:$0xff]
        %v1097 = vld [vmem:[%s736 + $0x16a] sm:$0xff]
        %v1098 = vld [vmem:[%s736 + $0x172] sm:$0xff]
        %v1099 = vld [vmem:[%s1 + $0x5] sm:$0x1]
        %v1100 = vlaneseq
        %v1101 = vshrl.u32 %v1100, 7
        %v1102 = vsub.s32 0, %v1101
        %v1103 = vrot.slane %v1099, %v1102
        %v1104 = vmul.f32 %v1067, %v1103
        %v1105 = vmul.f32 %v1068, %v1103
        %v1106 = vmul.f32 %v1069, %v1103
        %v1107 = vmul.f32 %v1070, %v1103
        %v1108 = vmul.f32 %v1071, %v1103
        %v1109 = vmul.f32 %v1072, %v1103
        %v1110 = vmul.f32 %v1073, %v1103
        %v1111 = vmul.f32 %v1074, %v1103
        %v1112 = vmul.f32 %v1075, %v1103
        %v1113 = vmul.f32 %v1076, %v1103
        %v1114 = vmul.f32 %v1077, %v1103
        %v1115 = vmul.f32 %v1078, %v1103
        %v1116 = vmul.f32 %v1079, %v1103
        %v1117 = vmul.f32 %v1080, %v1103
        %v1118 = vmul.f32 %v1081, %v1103
        %v1119 = vmul.f32 %v1082, %v1103
        %v1120 = vmul.f32 %v1083, %v1103
        %v1121 = vmul.f32 %v1084, %v1103
        %v1122 = vmul.f32 %v1085, %v1103
        %v1123 = vmul.f32 %v1086, %v1103
        %v1124 = vmul.f32 %v1087, %v1103
        %v1125 = vmul.f32 %v1088, %v1103
        %v1126 = vmul.f32 %v1089, %v1103
        %v1127 = vmul.f32 %v1090, %v1103
        %v1128 = vmul.f32 %v1091, %v1103
        %v1129 = vmul.f32 %v1092, %v1103
        %v1130 = vmul.f32 %v1093, %v1103
        %v1131 = vmul.f32 %v1094, %v1103
        %v1132 = vmul.f32 %v1095, %v1103
        %v1133 = vmul.f32 %v1096, %v1103
        %v1134 = vmul.f32 %v1097, %v1103
        %v1135 = vmul.f32 %v1098, %v1103
        %v1136 = vadd.f32 %v1035, %v1104
        %v1137 = vadd.f32 %v1036, %v1105
        %v1138 = vadd.f32 %v1037, %v1106
        %v1139 = vadd.f32 %v1038, %v1107
        %v1140 = vadd.f32 %v1039, %v1108
        %v1141 = vadd.f32 %v1040, %v1109
        %v1142 = vadd.f32 %v1041, %v1110
        %v1143 = vadd.f32 %v1042, %v1111
        %v1144 = vadd.f32 %v1043, %v1112
        %v1145 = vadd.f32 %v1044, %v1113
        %v1146 = vadd.f32 %v1045, %v1114
        %v1147 = vadd.f32 %v1046, %v1115
        %v1148 = vadd.f32 %v1047, %v1116
        %v1149 = vadd.f32 %v1048, %v1117
        %v1150 = vadd.f32 %v1049, %v1118
        %v1151 = vadd.f32 %v1050, %v1119
        %v1152 = vadd.f32 %v1051, %v1120
        %v1153 = vadd.f32 %v1052, %v1121
        %v1154 = vadd.f32 %v1053, %v1122
        %v1155 = vadd.f32 %v1054, %v1123
        %v1156 = vadd.f32 %v1055, %v1124
        %v1157 = vadd.f32 %v1056, %v1125
        %v1158 = vadd.f32 %v1057, %v1126
        %v1159 = vadd.f32 %v1058, %v1127
        %v1160 = vadd.f32 %v1059, %v1128
        %v1161 = vadd.f32 %v1060, %v1129
        %v1162 = vadd.f32 %v1061, %v1130
        %v1163 = vadd.f32 %v1062, %v1131
        %v1164 = vadd.f32 %v1063, %v1132
        %v1165 = vadd.f32 %v1064, %v1133
        %v1166 = vadd.f32 %v1065, %v1134
        %v1167 = vadd.f32 %v1066, %v1135
        %1168 = vst [vmem:[%s163] sm:$0xff] %v1136
        %1169 = vst [vmem:[%s163 + $0x8] sm:$0xff] %v1137
        %1170 = vst [vmem:[%s163 + $0x10] sm:$0xff] %v1138
        %1171 = vst [vmem:[%s163 + $0x18] sm:$0xff] %v1139
        %1172 = vst [vmem:[%s163 + $0x20] sm:$0xff] %v1140
        %1173 = vst [vmem:[%s163 + $0x28] sm:$0xff] %v1141
        %1174 = vst [vmem:[%s163 + $0x30] sm:$0xff] %v1142
        %1175 = vst [vmem:[%s163 + $0x38] sm:$0xff] %v1143
        %1176 = vst [vmem:[%s163 + $0x40] sm:$0xff] %v1144
        %1177 = vst [vmem:[%s163 + $0x48] sm:$0xff] %v1145
        %1178 = vst [vmem:[%s163 + $0x50] sm:$0xff] %v1146
        %1179 = vst [vmem:[%s163 + $0x58] sm:$0xff] %v1147
        %1180 = vst [vmem:[%s163 + $0x60] sm:$0xff] %v1148
        %1181 = vst [vmem:[%s163 + $0x68] sm:$0xff] %v1149
        %1182 = vst [vmem:[%s163 + $0x70] sm:$0xff] %v1150
        %1183 = vst [vmem:[%s163 + $0x78] sm:$0xff] %v1151
        %1184 = vst [vmem:[%s163 + $0x80] sm:$0xff] %v1152
        %1185 = vst [vmem:[%s163 + $0x88] sm:$0xff] %v1153
        %1186 = vst [vmem:[%s163 + $0x90] sm:$0xff] %v1154
        %1187 = vst [vmem:[%s163 + $0x98] sm:$0xff] %v1155
        %1188 = vst [vmem:[%s163 + $0xa0] sm:$0xff] %v1156
        %1189 = vst [vmem:[%s163 + $0xa8] sm:$0xff] %v1157
        %1190 = vst [vmem:[%s163 + $0xb0] sm:$0xff] %v1158
        %1191 = vst [vmem:[%s163 + $0xb8] sm:$0xff] %v1159
        %1192 = vst [vmem:[%s163 + $0xc0] sm:$0xff] %v1160
        %1193 = vst [vmem:[%s163 + $0xc8] sm:$0xff] %v1161
        %1194 = vst [vmem:[%s163 + $0xd0] sm:$0xff] %v1162
        %1195 = vst [vmem:[%s163 + $0xd8] sm:$0xff] %v1163
        %1196 = vst [vmem:[%s163 + $0xe0] sm:$0xff] %v1164
        %1197 = vst [vmem:[%s163 + $0xe8] sm:$0xff] %v1165
        %1198 = vst [vmem:[%s163 + $0xf0] sm:$0xff] %v1166
        %1199 = vst [vmem:[%s163 + $0xf8] sm:$0xff] %v1167
        %v1200 = vld [vmem:[%s163] sm:$0xff]
        %v1201 = vld [vmem:[%s163 + $0x8] sm:$0xff]
        %v1202 = vld [vmem:[%s163 + $0x10] sm:$0xff]
        %v1203 = vld [vmem:[%s163 + $0x18] sm:$0xff]
        %v1204 = vld [vmem:[%s163 + $0x20] sm:$0xff]
        %v1205 = vld [vmem:[%s163 + $0x28] sm:$0xff]
        %v1206 = vld [vmem:[%s163 + $0x30] sm:$0xff]
        %v1207 = vld [vmem:[%s163 + $0x38] sm:$0xff]
        %v1208 = vld [vmem:[%s163 + $0x40] sm:$0xff]
        %v1209 = vld [vmem:[%s163 + $0x48] sm:$0xff]
        %v1210 = vld [vmem:[%s163 + $0x50] sm:$0xff]
        %v1211 = vld [vmem:[%s163 + $0x58] sm:$0xff]
        %v1212 = vld [vmem:[%s163 + $0x60] sm:$0xff]
        %v1213 = vld [vmem:[%s163 + $0x68] sm:$0xff]
        %v1214 = vld [vmem:[%s163 + $0x70] sm:$0xff]
        %v1215 = vld [vmem:[%s163 + $0x78] sm:$0xff]
        %v1216 = vld [vmem:[%s163 + $0x80] sm:$0xff]
        %v1217 = vld [vmem:[%s163 + $0x88] sm:$0xff]
        %v1218 = vld [vmem:[%s163 + $0x90] sm:$0xff]
        %v1219 = vld [vmem:[%s163 + $0x98] sm:$0xff]
        %v1220 = vld [vmem:[%s163 + $0xa0] sm:$0xff]
        %v1221 = vld [vmem:[%s163 + $0xa8] sm:$0xff]
        %v1222 = vld [vmem:[%s163 + $0xb0] sm:$0xff]
        %v1223 = vld [vmem:[%s163 + $0xb8] sm:$0xff]
        %v1224 = vld [vmem:[%s163 + $0xc0] sm:$0xff]
        %v1225 = vld [vmem:[%s163 + $0xc8] sm:$0xff]
        %v1226 = vld [vmem:[%s163 + $0xd0] sm:$0xff]
        %v1227 = vld [vmem:[%s163 + $0xd8] sm:$0xff]
        %v1228 = vld [vmem:[%s163 + $0xe0] sm:$0xff]
        %v1229 = vld [vmem:[%s163 + $0xe8] sm:$0xff]
        %v1230 = vld [vmem:[%s163 + $0xf0] sm:$0xff]
        %v1231 = vld [vmem:[%s163 + $0xf8] sm:$0xff]
        %s1232 = scalar_lea.vmem %s168, 48
        %v1233 = vld [vmem:[%s1232] sm:$0xff]
        %v1234 = vld [vmem:[%s1232 + $0x8] sm:$0xff]
        %v1235 = vld [vmem:[%s1232 + $0x18] sm:$0xff]
        %v1236 = vld [vmem:[%s1232 + $0x20] sm:$0xff]
        %v1237 = vld [vmem:[%s1232 + $0x30] sm:$0xff]
        %v1238 = vld [vmem:[%s1232 + $0x38] sm:$0xff]
        %v1239 = vld [vmem:[%s1232 + $0x48] sm:$0xff]
        %v1240 = vld [vmem:[%s1232 + $0x50] sm:$0xff]
        %v1241 = vld [vmem:[%s1232 + $0x60] sm:$0xff]
        %v1242 = vld [vmem:[%s1232 + $0x68] sm:$0xff]
        %v1243 = vld [vmem:[%s1232 + $0x78] sm:$0xff]
        %v1244 = vld [vmem:[%s1232 + $0x80] sm:$0xff]
        %v1245 = vld [vmem:[%s1232 + $0x90] sm:$0xff]
        %v1246 = vld [vmem:[%s1232 + $0x98] sm:$0xff]
        %v1247 = vld [vmem:[%s1232 + $0xa8] sm:$0xff]
        %v1248 = vld [vmem:[%s1232 + $0xb0] sm:$0xff]
        %v1249 = vld [vmem:[%s1232 + $0xc0] sm:$0xff]
        %v1250 = vld [vmem:[%s1232 + $0xc8] sm:$0xff]
        %v1251 = vld [vmem:[%s1232 + $0xd8] sm:$0xff]
        %v1252 = vld [vmem:[%s1232 + $0xe0] sm:$0xff]
        %v1253 = vld [vmem:[%s1232 + $0xf0] sm:$0xff]
        %v1254 = vld [vmem:[%s1232 + $0xf8] sm:$0xff]
        %v1255 = vld [vmem:[%s1232 + $0x108] sm:$0xff]
        %v1256 = vld [vmem:[%s1232 + $0x110] sm:$0xff]
        %v1257 = vld [vmem:[%s1232 + $0x120] sm:$0xff]
        %v1258 = vld [vmem:[%s1232 + $0x128] sm:$0xff]
        %v1259 = vld [vmem:[%s1232 + $0x138] sm:$0xff]
        %v1260 = vld [vmem:[%s1232 + $0x140] sm:$0xff]
        %v1261 = vld [vmem:[%s1232 + $0x150] sm:$0xff]
        %v1262 = vld [vmem:[%s1232 + $0x158] sm:$0xff]
        %v1263 = vld [vmem:[%s1232 + $0x168] sm:$0xff]
        %v1264 = vld [vmem:[%s1232 + $0x170] sm:$0xff]
        %v1265 = vld [vmem:[%s1 + $0x6] sm:$0x1]
        %v1266 = vlaneseq
        %v1267 = vshrl.u32 %v1266, 7
        %v1268 = vsub.s32 0, %v1267
        %v1269 = vrot.slane %v1265, %v1268
        %v1270 = vmul.f32 %v1233, %v1269
        %v1271 = vmul.f32 %v1234, %v1269
        %v1272 = vmul.f32 %v1235, %v1269
        %v1273 = vmul.f32 %v1236, %v1269
        %v1274 = vmul.f32 %v1237, %v1269
        %v1275 = vmul.f32 %v1238, %v1269
        %v1276 = vmul.f32 %v1239, %v1269
        %v1277 = vmul.f32 %v1240, %v1269
        %v1278 = vmul.f32 %v1241, %v1269
        %v1279 = vmul.f32 %v1242, %v1269
        %v1280 = vmul.f32 %v1243, %v1269
        %v1281 = vmul.f32 %v1244, %v1269
        %v1282 = vmul.f32 %v1245, %v1269
        %v1283 = vmul.f32 %v1246, %v1269
        %v1284 = vmul.f32 %v1247, %v1269
        %v1285 = vmul.f32 %v1248, %v1269
        %v1286 = vmul.f32 %v1249, %v1269
        %v1287 = vmul.f32 %v1250, %v1269
        %v1288 = vmul.f32 %v1251, %v1269
        %v1289 = vmul.f32 %v1252, %v1269
        %v1290 = vmul.f32 %v1253, %v1269
        %v1291 = vmul.f32 %v1254, %v1269
        %v1292 = vmul.f32 %v1255, %v1269
        %v1293 = vmul.f32 %v1256, %v1269
        %v1294 = vmul.f32 %v1257, %v1269
        %v1295 = vmul.f32 %v1258, %v1269
        %v1296 = vmul.f32 %v1259, %v1269
        %v1297 = vmul.f32 %v1260, %v1269
        %v1298 = vmul.f32 %v1261, %v1269
        %v1299 = vmul.f32 %v1262, %v1269
        %v1300 = vmul.f32 %v1263, %v1269
        %v1301 = vmul.f32 %v1264, %v1269
        %v1302 = vadd.f32 %v1200, %v1270
        %v1303 = vadd.f32 %v1201, %v1271
        %v1304 = vadd.f32 %v1202, %v1272
        %v1305 = vadd.f32 %v1203, %v1273
        %v1306 = vadd.f32 %v1204, %v1274
        %v1307 = vadd.f32 %v1205, %v1275
        %v1308 = vadd.f32 %v1206, %v1276
        %v1309 = vadd.f32 %v1207, %v1277
        %v1310 = vadd.f32 %v1208, %v1278
        %v1311 = vadd.f32 %v1209, %v1279
        %v1312 = vadd.f32 %v1210, %v1280
        %v1313 = vadd.f32 %v1211, %v1281
        %v1314 = vadd.f32 %v1212, %v1282
        %v1315 = vadd.f32 %v1213, %v1283
        %v1316 = vadd.f32 %v1214, %v1284
        %v1317 = vadd.f32 %v1215, %v1285
        %v1318 = vadd.f32 %v1216, %v1286
        %v1319 = vadd.f32 %v1217, %v1287
        %v1320 = vadd.f32 %v1218, %v1288
        %v1321 = vadd.f32 %v1219, %v1289
        %v1322 = vadd.f32 %v1220, %v1290
        %v1323 = vadd.f32 %v1221, %v1291
        %v1324 = vadd.f32 %v1222, %v1292
        %v1325 = vadd.f32 %v1223, %v1293
        %v1326 = vadd.f32 %v1224, %v1294
        %v1327 = vadd.f32 %v1225, %v1295
        %v1328 = vadd.f32 %v1226, %v1296
        %v1329 = vadd.f32 %v1227, %v1297
        %v1330 = vadd.f32 %v1228, %v1298
        %v1331 = vadd.f32 %v1229, %v1299
        %v1332 = vadd.f32 %v1230, %v1300
        %v1333 = vadd.f32 %v1231, %v1301
        %1334 = vst [vmem:[%s163] sm:$0xff] %v1302
        %1335 = vst [vmem:[%s163 + $0x8] sm:$0xff] %v1303
        %1336 = vst [vmem:[%s163 + $0x10] sm:$0xff] %v1304
        %1337 = vst [vmem:[%s163 + $0x18] sm:$0xff] %v1305
        %1338 = vst [vmem:[%s163 + $0x20] sm:$0xff] %v1306
        %1339 = vst [vmem:[%s163 + $0x28] sm:$0xff] %v1307
        %1340 = vst [vmem:[%s163 + $0x30] sm:$0xff] %v1308
        %1341 = vst [vmem:[%s163 + $0x38] sm:$0xff] %v1309
        %1342 = vst [vmem:[%s163 + $0x40] sm:$0xff] %v1310
        %1343 = vst [vmem:[%s163 + $0x48] sm:$0xff] %v1311
        %1344 = vst [vmem:[%s163 + $0x50] sm:$0xff] %v1312
        %1345 = vst [vmem:[%s163 + $0x58] sm:$0xff] %v1313
        %1346 = vst [vmem:[%s163 + $0x60] sm:$0xff] %v1314
        %1347 = vst [vmem:[%s163 + $0x68] sm:$0xff] %v1315
        %1348 = vst [vmem:[%s163 + $0x70] sm:$0xff] %v1316
        %1349 = vst [vmem:[%s163 + $0x78] sm:$0xff] %v1317
        %1350 = vst [vmem:[%s163 + $0x80] sm:$0xff] %v1318
        %1351 = vst [vmem:[%s163 + $0x88] sm:$0xff] %v1319
        %1352 = vst [vmem:[%s163 + $0x90] sm:$0xff] %v1320
        %1353 = vst [vmem:[%s163 + $0x98] sm:$0xff] %v1321
        %1354 = vst [vmem:[%s163 + $0xa0] sm:$0xff] %v1322
        %1355 = vst [vmem:[%s163 + $0xa8] sm:$0xff] %v1323
        %1356 = vst [vmem:[%s163 + $0xb0] sm:$0xff] %v1324
        %1357 = vst [vmem:[%s163 + $0xb8] sm:$0xff] %v1325
        %1358 = vst [vmem:[%s163 + $0xc0] sm:$0xff] %v1326
        %1359 = vst [vmem:[%s163 + $0xc8] sm:$0xff] %v1327
        %1360 = vst [vmem:[%s163 + $0xd0] sm:$0xff] %v1328
        %1361 = vst [vmem:[%s163 + $0xd8] sm:$0xff] %v1329
        %1362 = vst [vmem:[%s163 + $0xe0] sm:$0xff] %v1330
        %1363 = vst [vmem:[%s163 + $0xe8] sm:$0xff] %v1331
        %1364 = vst [vmem:[%s163 + $0xf0] sm:$0xff] %v1332
        %1365 = vst [vmem:[%s163 + $0xf8] sm:$0xff] %v1333
        %v1366 = vld [vmem:[%s163] sm:$0xff]
        %v1367 = vld [vmem:[%s163 + $0x8] sm:$0xff]
        %v1368 = vld [vmem:[%s163 + $0x10] sm:$0xff]
        %v1369 = vld [vmem:[%s163 + $0x18] sm:$0xff]
        %v1370 = vld [vmem:[%s163 + $0x20] sm:$0xff]
        %v1371 = vld [vmem:[%s163 + $0x28] sm:$0xff]
        %v1372 = vld [vmem:[%s163 + $0x30] sm:$0xff]
        %v1373 = vld [vmem:[%s163 + $0x38] sm:$0xff]
        %v1374 = vld [vmem:[%s163 + $0x40] sm:$0xff]
        %v1375 = vld [vmem:[%s163 + $0x48] sm:$0xff]
        %v1376 = vld [vmem:[%s163 + $0x50] sm:$0xff]
        %v1377 = vld [vmem:[%s163 + $0x58] sm:$0xff]
        %v1378 = vld [vmem:[%s163 + $0x60] sm:$0xff]
        %v1379 = vld [vmem:[%s163 + $0x68] sm:$0xff]
        %v1380 = vld [vmem:[%s163 + $0x70] sm:$0xff]
        %v1381 = vld [vmem:[%s163 + $0x78] sm:$0xff]
        %v1382 = vld [vmem:[%s163 + $0x80] sm:$0xff]
        %v1383 = vld [vmem:[%s163 + $0x88] sm:$0xff]
        %v1384 = vld [vmem:[%s163 + $0x90] sm:$0xff]
        %v1385 = vld [vmem:[%s163 + $0x98] sm:$0xff]
        %v1386 = vld [vmem:[%s163 + $0xa0] sm:$0xff]
        %v1387 = vld [vmem:[%s163 + $0xa8] sm:$0xff]
        %v1388 = vld [vmem:[%s163 + $0xb0] sm:$0xff]
        %v1389 = vld [vmem:[%s163 + $0xb8] sm:$0xff]
        %v1390 = vld [vmem:[%s163 + $0xc0] sm:$0xff]
        %v1391 = vld [vmem:[%s163 + $0xc8] sm:$0xff]
        %v1392 = vld [vmem:[%s163 + $0xd0] sm:$0xff]
        %v1393 = vld [vmem:[%s163 + $0xd8] sm:$0xff]
        %v1394 = vld [vmem:[%s163 + $0xe0] sm:$0xff]
        %v1395 = vld [vmem:[%s163 + $0xe8] sm:$0xff]
        %v1396 = vld [vmem:[%s163 + $0xf0] sm:$0xff]
        %v1397 = vld [vmem:[%s163 + $0xf8] sm:$0xff]
        %v1398 = vld [vmem:[%s1232 + $0x1] sm:$0xff]
        %v1399 = vld [vmem:[%s1232 + $0x9] sm:$0xff]
        %v1400 = vld [vmem:[%s1232 + $0x19] sm:$0xff]
        %v1401 = vld [vmem:[%s1232 + $0x21] sm:$0xff]
        %v1402 = vld [vmem:[%s1232 + $0x31] sm:$0xff]
        %v1403 = vld [vmem:[%s1232 + $0x39] sm:$0xff]
        %v1404 = vld [vmem:[%s1232 + $0x49] sm:$0xff]
        %v1405 = vld [vmem:[%s1232 + $0x51] sm:$0xff]
        %v1406 = vld [vmem:[%s1232 + $0x61] sm:$0xff]
        %v1407 = vld [vmem:[%s1232 + $0x69] sm:$0xff]
        %v1408 = vld [vmem:[%s1232 + $0x79] sm:$0xff]
        %v1409 = vld [vmem:[%s1232 + $0x81] sm:$0xff]
        %v1410 = vld [vmem:[%s1232 + $0x91] sm:$0xff]
        %v1411 = vld [vmem:[%s1232 + $0x99] sm:$0xff]
        %v1412 = vld [vmem:[%s1232 + $0xa9] sm:$0xff]
        %v1413 = vld [vmem:[%s1232 + $0xb1] sm:$0xff]
        %v1414 = vld [vmem:[%s1232 + $0xc1] sm:$0xff]
        %v1415 = vld [vmem:[%s1232 + $0xc9] sm:$0xff]
        %v1416 = vld [vmem:[%s1232 + $0xd9] sm:$0xff]
        %v1417 = vld [vmem:[%s1232 + $0xe1] sm:$0xff]
        %v1418 = vld [vmem:[%s1232 + $0xf1] sm:$0xff]
        %v1419 = vld [vmem:[%s1232 + $0xf9] sm:$0xff]
        %v1420 = vld [vmem:[%s1232 + $0x109] sm:$0xff]
        %v1421 = vld [vmem:[%s1232 + $0x111] sm:$0xff]
        %v1422 = vld [vmem:[%s1232 + $0x121] sm:$0xff]
        %v1423 = vld [vmem:[%s1232 + $0x129] sm:$0xff]
        %v1424 = vld [vmem:[%s1232 + $0x139] sm:$0xff]
        %v1425 = vld [vmem:[%s1232 + $0x141] sm:$0xff]
        %v1426 = vld [vmem:[%s1232 + $0x151] sm:$0xff]
        %v1427 = vld [vmem:[%s1232 + $0x159] sm:$0xff]
        %v1428 = vld [vmem:[%s1232 + $0x169] sm:$0xff]
        %v1429 = vld [vmem:[%s1232 + $0x171] sm:$0xff]
        %v1430 = vld [vmem:[%s1 + $0x7] sm:$0x1]
        %v1431 = vlaneseq
        %v1432 = vshrl.u32 %v1431, 7
        %v1433 = vsub.s32 0, %v1432
        %v1434 = vrot.slane %v1430, %v1433
        %v1435 = vmul.f32 %v1398, %v1434
        %v1436 = vmul.f32 %v1399, %v1434
        %v1437 = vmul.f32 %v1400, %v1434
        %v1438 = vmul.f32 %v1401, %v1434
        %v1439 = vmul.f32 %v1402, %v1434
        %v1440 = vmul.f32 %v1403, %v1434
        %v1441 = vmul.f32 %v1404, %v1434
        %v1442 = vmul.f32 %v1405, %v1434
        %v1443 = vmul.f32 %v1406, %v1434
        %v1444 = vmul.f32 %v1407, %v1434
        %v1445 = vmul.f32 %v1408, %v1434
        %v1446 = vmul.f32 %v1409, %v1434
        %v1447 = vmul.f32 %v1410, %v1434
        %v1448 = vmul.f32 %v1411, %v1434
        %v1449 = vmul.f32 %v1412, %v1434
        %v1450 = vmul.f32 %v1413, %v1434
        %v1451 = vmul.f32 %v1414, %v1434
        %v1452 = vmul.f32 %v1415, %v1434
        %v1453 = vmul.f32 %v1416, %v1434
        %v1454 = vmul.f32 %v1417, %v1434
        %v1455 = vmul.f32 %v1418, %v1434
        %v1456 = vmul.f32 %v1419, %v1434
        %v1457 = vmul.f32 %v1420, %v1434
        %v1458 = vmul.f32 %v1421, %v1434
        %v1459 = vmul.f32 %v1422, %v1434
        %v1460 = vmul.f32 %v1423, %v1434
        %v1461 = vmul.f32 %v1424, %v1434
        %v1462 = vmul.f32 %v1425, %v1434
        %v1463 = vmul.f32 %v1426, %v1434
        %v1464 = vmul.f32 %v1427, %v1434
        %v1465 = vmul.f32 %v1428, %v1434
        %v1466 = vmul.f32 %v1429, %v1434
        %v1467 = vadd.f32 %v1366, %v1435
        %v1468 = vadd.f32 %v1367, %v1436
        %v1469 = vadd.f32 %v1368, %v1437
        %v1470 = vadd.f32 %v1369, %v1438
        %v1471 = vadd.f32 %v1370, %v1439
        %v1472 = vadd.f32 %v1371, %v1440
        %v1473 = vadd.f32 %v1372, %v1441
        %v1474 = vadd.f32 %v1373, %v1442
        %v1475 = vadd.f32 %v1374, %v1443
        %v1476 = vadd.f32 %v1375, %v1444
        %v1477 = vadd.f32 %v1376, %v1445
        %v1478 = vadd.f32 %v1377, %v1446
        %v1479 = vadd.f32 %v1378, %v1447
        %v1480 = vadd.f32 %v1379, %v1448
        %v1481 = vadd.f32 %v1380, %v1449
        %v1482 = vadd.f32 %v1381, %v1450
        %v1483 = vadd.f32 %v1382, %v1451
        %v1484 = vadd.f32 %v1383, %v1452
        %v1485 = vadd.f32 %v1384, %v1453
        %v1486 = vadd.f32 %v1385, %v1454
        %v1487 = vadd.f32 %v1386, %v1455
        %v1488 = vadd.f32 %v1387, %v1456
        %v1489 = vadd.f32 %v1388, %v1457
        %v1490 = vadd.f32 %v1389, %v1458
        %v1491 = vadd.f32 %v1390, %v1459
        %v1492 = vadd.f32 %v1391, %v1460
        %v1493 = vadd.f32 %v1392, %v1461
        %v1494 = vadd.f32 %v1393, %v1462
        %v1495 = vadd.f32 %v1394, %v1463
        %v1496 = vadd.f32 %v1395, %v1464
        %v1497 = vadd.f32 %v1396, %v1465
        %v1498 = vadd.f32 %v1397, %v1466
        %1499 = vst [vmem:[%s163] sm:$0xff] %v1467
        %1500 = vst [vmem:[%s163 + $0x8] sm:$0xff] %v1468
        %1501 = vst [vmem:[%s163 + $0x10] sm:$0xff] %v1469
        %1502 = vst [vmem:[%s163 + $0x18] sm:$0xff] %v1470
        %1503 = vst [vmem:[%s163 + $0x20] sm:$0xff] %v1471
        %1504 = vst [vmem:[%s163 + $0x28] sm:$0xff] %v1472
        %1505 = vst [vmem:[%s163 + $0x30] sm:$0xff] %v1473
        %1506 = vst [vmem:[%s163 + $0x38] sm:$0xff] %v1474
        %1507 = vst [vmem:[%s163 + $0x40] sm:$0xff] %v1475
        %1508 = vst [vmem:[%s163 + $0x48] sm:$0xff] %v1476
        %1509 = vst [vmem:[%s163 + $0x50] sm:$0xff] %v1477
        %1510 = vst [vmem:[%s163 + $0x58] sm:$0xff] %v1478
        %1511 = vst [vmem:[%s163 + $0x60] sm:$0xff] %v1479
        %1512 = vst [vmem:[%s163 + $0x68] sm:$0xff] %v1480
        %1513 = vst [vmem:[%s163 + $0x70] sm:$0xff] %v1481
        %1514 = vst [vmem:[%s163 + $0x78] sm:$0xff] %v1482
        %1515 = vst [vmem:[%s163 + $0x80] sm:$0xff] %v1483
        %1516 = vst [vmem:[%s163 + $0x88] sm:$0xff] %v1484
        %1517 = vst [vmem:[%s163 + $0x90] sm:$0xff] %v1485
        %1518 = vst [vmem:[%s163 + $0x98] sm:$0xff] %v1486
        %1519 = vst [vmem:[%s163 + $0xa0] sm:$0xff] %v1487
        %1520 = vst [vmem:[%s163 + $0xa8] sm:$0xff] %v1488
        %1521 = vst [vmem:[%s163 + $0xb0] sm:$0xff] %v1489
        %1522 = vst [vmem:[%s163 + $0xb8] sm:$0xff] %v1490
        %1523 = vst [vmem:[%s163 + $0xc0] sm:$0xff] %v1491
        %1524 = vst [vmem:[%s163 + $0xc8] sm:$0xff] %v1492
        %1525 = vst [vmem:[%s163 + $0xd0] sm:$0xff] %v1493
        %1526 = vst [vmem:[%s163 + $0xd8] sm:$0xff] %v1494
        %1527 = vst [vmem:[%s163 + $0xe0] sm:$0xff] %v1495
        %1528 = vst [vmem:[%s163 + $0xe8] sm:$0xff] %v1496
        %1529 = vst [vmem:[%s163 + $0xf0] sm:$0xff] %v1497
        %1530 = vst [vmem:[%s163 + $0xf8] sm:$0xff] %v1498
        %v1531 = vld [vmem:[%s163] sm:$0xff]
        %v1532 = vld [vmem:[%s163 + $0x8] sm:$0xff]
        %v1533 = vld [vmem:[%s163 + $0x10] sm:$0xff]
        %v1534 = vld [vmem:[%s163 + $0x18] sm:$0xff]
        %v1535 = vld [vmem:[%s163 + $0x20] sm:$0xff]
        %v1536 = vld [vmem:[%s163 + $0x28] sm:$0xff]
        %v1537 = vld [vmem:[%s163 + $0x30] sm:$0xff]
        %v1538 = vld [vmem:[%s163 + $0x38] sm:$0xff]
        %v1539 = vld [vmem:[%s163 + $0x40] sm:$0xff]
        %v1540 = vld [vmem:[%s163 + $0x48] sm:$0xff]
        %v1541 = vld [vmem:[%s163 + $0x50] sm:$0xff]
        %v1542 = vld [vmem:[%s163 + $0x58] sm:$0xff]
        %v1543 = vld [vmem:[%s163 + $0x60] sm:$0xff]
        %v1544 = vld [vmem:[%s163 + $0x68] sm:$0xff]
        %v1545 = vld [vmem:[%s163 + $0x70] sm:$0xff]
        %v1546 = vld [vmem:[%s163 + $0x78] sm:$0xff]
        %v1547 = vld [vmem:[%s163 + $0x80] sm:$0xff]
        %v1548 = vld [vmem:[%s163 + $0x88] sm:$0xff]
        %v1549 = vld [vmem:[%s163 + $0x90] sm:$0xff]
        %v1550 = vld [vmem:[%s163 + $0x98] sm:$0xff]
        %v1551 = vld [vmem:[%s163 + $0xa0] sm:$0xff]
        %v1552 = vld [vmem:[%s163 + $0xa8] sm:$0xff]
        %v1553 = vld [vmem:[%s163 + $0xb0] sm:$0xff]
        %v1554 = vld [vmem:[%s163 + $0xb8] sm:$0xff]
        %v1555 = vld [vmem:[%s163 + $0xc0] sm:$0xff]
        %v1556 = vld [vmem:[%s163 + $0xc8] sm:$0xff]
        %v1557 = vld [vmem:[%s163 + $0xd0] sm:$0xff]
        %v1558 = vld [vmem:[%s163 + $0xd8] sm:$0xff]
        %v1559 = vld [vmem:[%s163 + $0xe0] sm:$0xff]
        %v1560 = vld [vmem:[%s163 + $0xe8] sm:$0xff]
        %v1561 = vld [vmem:[%s163 + $0xf0] sm:$0xff]
        %v1562 = vld [vmem:[%s163 + $0xf8] sm:$0xff]
        %v1563 = vld [vmem:[%s1232 + $0x2] sm:$0xff]
        %v1564 = vld [vmem:[%s1232 + $0xa] sm:$0xff]
        %v1565 = vld [vmem:[%s1232 + $0x1a] sm:$0xff]
        %v1566 = vld [vmem:[%s1232 + $0x22] sm:$0xff]
        %v1567 = vld [vmem:[%s1232 + $0x32] sm:$0xff]
        %v1568 = vld [vmem:[%s1232 + $0x3a] sm:$0xff]
        %v1569 = vld [vmem:[%s1232 + $0x4a] sm:$0xff]
        %v1570 = vld [vmem:[%s1232 + $0x52] sm:$0xff]
        %v1571 = vld [vmem:[%s1232 + $0x62] sm:$0xff]
        %v1572 = vld [vmem:[%s1232 + $0x6a] sm:$0xff]
        %v1573 = vld [vmem:[%s1232 + $0x7a] sm:$0xff]
        %v1574 = vld [vmem:[%s1232 + $0x82] sm:$0xff]
        %v1575 = vld [vmem:[%s1232 + $0x92] sm:$0xff]
        %v1576 = vld [vmem:[%s1232 + $0x9a] sm:$0xff]
        %v1577 = vld [vmem:[%s1232 + $0xaa] sm:$0xff]
        %v1578 = vld [vmem:[%s1232 + $0xb2] sm:$0xff]
        %v1579 = vld [vmem:[%s1232 + $0xc2] sm:$0xff]
        %v1580 = vld [vmem:[%s1232 + $0xca] sm:$0xff]
        %v1581 = vld [vmem:[%s1232 + $0xda] sm:$0xff]
        %v1582 = vld [vmem:[%s1232 + $0xe2] sm:$0xff]
        %v1583 = vld [vmem:[%s1232 + $0xf2] sm:$0xff]
        %v1584 = vld [vmem:[%s1232 + $0xfa] sm:$0xff]
        %v1585 = vld [vmem:[%s1232 + $0x10a] sm:$0xff]
        %v1586 = vld [vmem:[%s1232 + $0x112] sm:$0xff]
        %v1587 = vld [vmem:[%s1232 + $0x122] sm:$0xff]
        %v1588 = vld [vmem:[%s1232 + $0x12a] sm:$0xff]
        %v1589 = vld [vmem:[%s1232 + $0x13a] sm:$0xff]
        %v1590 = vld [vmem:[%s1232 + $0x142] sm:$0xff]
        %v1591 = vld [vmem:[%s1232 + $0x152] sm:$0xff]
        %v1592 = vld [vmem:[%s1232 + $0x15a] sm:$0xff]
        %v1593 = vld [vmem:[%s1232 + $0x16a] sm:$0xff]
        %v1594 = vld [vmem:[%s1232 + $0x172] sm:$0xff]
        %v1595 = vld [vmem:[%s1 + $0x8] sm:$0x1]
        %v1596 = vlaneseq
        %v1597 = vshrl.u32 %v1596, 7
        %v1598 = vsub.s32 0, %v1597
        %v1599 = vrot.slane %v1595, %v1598
        %v1600 = vmul.f32 %v1563, %v1599
        %v1601 = vmul.f32 %v1564, %v1599
        %v1602 = vmul.f32 %v1565, %v1599
        %v1603 = vmul.f32 %v1566, %v1599
        %v1604 = vmul.f32 %v1567, %v1599
        %v1605 = vmul.f32 %v1568, %v1599
        %v1606 = vmul.f32 %v1569, %v1599
        %v1607 = vmul.f32 %v1570, %v1599
        %v1608 = vmul.f32 %v1571, %v1599
        %v1609 = vmul.f32 %v1572, %v1599
        %v1610 = vmul.f32 %v1573, %v1599
        %v1611 = vmul.f32 %v1574, %v1599
        %v1612 = vmul.f32 %v1575, %v1599
        %v1613 = vmul.f32 %v1576, %v1599
        %v1614 = vmul.f32 %v1577, %v1599
        %v1615 = vmul.f32 %v1578, %v1599
        %v1616 = vmul.f32 %v1579, %v1599
        %v1617 = vmul.f32 %v1580, %v1599
        %v1618 = vmul.f32 %v1581, %v1599
        %v1619 = vmul.f32 %v1582, %v1599
        %v1620 = vmul.f32 %v1583, %v1599
        %v1621 = vmul.f32 %v1584, %v1599
        %v1622 = vmul.f32 %v1585, %v1599
        %v1623 = vmul.f32 %v1586, %v1599
        %v1624 = vmul.f32 %v1587, %v1599
        %v1625 = vmul.f32 %v1588, %v1599
        %v1626 = vmul.f32 %v1589, %v1599
        %v1627 = vmul.f32 %v1590, %v1599
        %v1628 = vmul.f32 %v1591, %v1599
        %v1629 = vmul.f32 %v1592, %v1599
        %v1630 = vmul.f32 %v1593, %v1599
        %v1631 = vmul.f32 %v1594, %v1599
        %v1632 = vadd.f32 %v1531, %v1600
        %v1633 = vadd.f32 %v1532, %v1601
        %v1634 = vadd.f32 %v1533, %v1602
        %v1635 = vadd.f32 %v1534, %v1603
        %v1636 = vadd.f32 %v1535, %v1604
        %v1637 = vadd.f32 %v1536, %v1605
        %v1638 = vadd.f32 %v1537, %v1606
        %v1639 = vadd.f32 %v1538, %v1607
        %v1640 = vadd.f32 %v1539, %v1608
        %v1641 = vadd.f32 %v1540, %v1609
        %v1642 = vadd.f32 %v1541, %v1610
        %v1643 = vadd.f32 %v1542, %v1611
        %v1644 = vadd.f32 %v1543, %v1612
        %v1645 = vadd.f32 %v1544, %v1613
        %v1646 = vadd.f32 %v1545, %v1614
        %v1647 = vadd.f32 %v1546, %v1615
        %v1648 = vadd.f32 %v1547, %v1616
        %v1649 = vadd.f32 %v1548, %v1617
        %v1650 = vadd.f32 %v1549, %v1618
        %v1651 = vadd.f32 %v1550, %v1619
        %v1652 = vadd.f32 %v1551, %v1620
        %v1653 = vadd.f32 %v1552, %v1621
        %v1654 = vadd.f32 %v1553, %v1622
        %v1655 = vadd.f32 %v1554, %v1623
        %v1656 = vadd.f32 %v1555, %v1624
        %v1657 = vadd.f32 %v1556, %v1625
        %v1658 = vadd.f32 %v1557, %v1626
        %v1659 = vadd.f32 %v1558, %v1627
        %v1660 = vadd.f32 %v1559, %v1628
        %v1661 = vadd.f32 %v1560, %v1629
        %v1662 = vadd.f32 %v1561, %v1630
        %v1663 = vadd.f32 %v1562, %v1631
        %1664 = vst [vmem:[%s163] sm:$0xff] %v1632
        %1665 = vst [vmem:[%s163 + $0x8] sm:$0xff] %v1633
        %1666 = vst [vmem:[%s163 + $0x10] sm:$0xff] %v1634
        %1667 = vst [vmem:[%s163 + $0x18] sm:$0xff] %v1635
        %1668 = vst [vmem:[%s163 + $0x20] sm:$0xff] %v1636
        %1669 = vst [vmem:[%s163 + $0x28] sm:$0xff] %v1637
        %1670 = vst [vmem:[%s163 + $0x30] sm:$0xff] %v1638
        %1671 = vst [vmem:[%s163 + $0x38] sm:$0xff] %v1639
        %1672 = vst [vmem:[%s163 + $0x40] sm:$0xff] %v1640
        %1673 = vst [vmem:[%s163 + $0x48] sm:$0xff] %v1641
        %1674 = vst [vmem:[%s163 + $0x50] sm:$0xff] %v1642
        %1675 = vst [vmem:[%s163 + $0x58] sm:$0xff] %v1643
        %1676 = vst [vmem:[%s163 + $0x60] sm:$0xff] %v1644
        %1677 = vst [vmem:[%s163 + $0x68] sm:$0xff] %v1645
        %1678 = vst [vmem:[%s163 + $0x70] sm:$0xff] %v1646
        %1679 = vst [vmem:[%s163 + $0x78] sm:$0xff] %v1647
        %1680 = vst [vmem:[%s163 + $0x80] sm:$0xff] %v1648
        %1681 = vst [vmem:[%s163 + $0x88] sm:$0xff] %v1649
        %1682 = vst [vmem:[%s163 + $0x90] sm:$0xff] %v1650
        %1683 = vst [vmem:[%s163 + $0x98] sm:$0xff] %v1651
        %1684 = vst [vmem:[%s163 + $0xa0] sm:$0xff] %v1652
        %1685 = vst [vmem:[%s163 + $0xa8] sm:$0xff] %v1653
        %1686 = vst [vmem:[%s163 + $0xb0] sm:$0xff] %v1654
        %1687 = vst [vmem:[%s163 + $0xb8] sm:$0xff] %v1655
        %1688 = vst [vmem:[%s163 + $0xc0] sm:$0xff] %v1656
        %1689 = vst [vmem:[%s163 + $0xc8] sm:$0xff] %v1657
        %1690 = vst [vmem:[%s163 + $0xd0] sm:$0xff] %v1658
        %1691 = vst [vmem:[%s163 + $0xd8] sm:$0xff] %v1659
        %1692 = vst [vmem:[%s163 + $0xe0] sm:$0xff] %v1660
        %1693 = vst [vmem:[%s163 + $0xe8] sm:$0xff] %v1661
        %1694 = vst [vmem:[%s163 + $0xf0] sm:$0xff] %v1662
        %1695 = vst [vmem:[%s163 + $0xf8] sm:$0xff] %v1663
        %s1696 = sand.u32 %s93, 1
        %s1697 = scalar_lea.sflag [#allocation3], %s1696
        %s1698 = sand.u32 %s93, 1
        %s1699 = smul.addr %s1698, 256
        %s1700 = scalar_lea.vmem [#allocation2], %s1699
        // Predicated region
        $region33: #{tpu_custom_call.1} parent=31 // pred_check
          %p1701 = pneg %p103
        $region34: #{tpu_custom_call.1} parent=31 // pred_check_branch
          %1703 = sbr.rel (%p1701) target = $region36
        $region35: #{tpu_custom_call.1} parent=31 // pred_region
          %s1705 = ssub.s32 4096, 4096
          %1706 = vsyncadd %s1697, %s1705
          %s1707 = smul.addr %s17, 32
          %s1708 = smul.addr %s1707, 128
          %s1709 = scalar_lea.hbm %s3, %s1708
          %s1710 = sshll.u32 %s1700, 4
          %s1711 = int_to_ptr.vmem [resolvable:$true] %s1710
          %1716 = dma.vmem_to_hbm [thread:$0]  %s1711, 4096, %s1709, %s1697, 128, 128, 8
        $region36: #{tpu_custom_call.1} parent=31 // pred_fallthru
          _
      $region32: #{tpu_custom_call.1} parent=5 // pred_fallthru
        _
      %p1717 = scmp.le.s32.totalorder 2, %s12
      // Predicated region
      $region37: #{tpu_custom_call.1} parent=5 // pred_check
        %p1718 = pneg %p1717
      $region38: #{tpu_custom_call.1} parent=5 // pred_check_branch
        %1720 = sbr.rel (%p1718) target = $region40
      $region39: #{tpu_custom_call.1} parent=5 // pred_region
        %s1721 = ssub.s32 %s12, 2
        // Predicated region
        $region41: #{tpu_custom_call.1} parent=39 // pred_check
          %p1722 = pneg %p109
        $region42: #{tpu_custom_call.1} parent=39 // pred_check_branch
          %1724 = sbr.rel (%p1722) target = $region44
        $region43: #{tpu_custom_call.1} parent=39 // pred_region
          %s1725 = sand.u32 %s94, 1
          %s1726 = scalar_lea.sflag [#allocation3], %s1725
          %s1727 = sand.u32 %s94, 1
          %s1728 = smul.addr %s1727, 256
          %s1729 = scalar_lea.vmem [#allocation2], %s1728
          %1730 = dma.done %s1726, 4096
        $region44: #{tpu_custom_call.1} parent=39 // pred_fallthru
          _
      $region40: #{tpu_custom_call.1} parent=5 // pred_fallthru
        _
    $region6: #{tpu_custom_call.1} parent=1 // loop_footer
      %s16 = sadd.s32 1, %s12
    $region7: #{tpu_custom_call.1} parent=1 // loop_footer_branch
      %11 = sbr.rel target = $region3
    $region8: #{tpu_custom_call.1} parent=1 // loop_exit
      _
    %1731 = vsyncpa [#allocation3], 1
    %s1732 = scalar_lea.sflag [#allocation3], 1
    %1733 = vsyncpa %s1732, 1

</llo_original>
